<compile_context>
chip_gen: v7x
topology: tpu7x:2x2x1
jax: 0.10.0
libtpu: 0.0.40
codegen_flags: <defaults>
</compile_context>

<pallas_src>
import functools
import math

import jax
import jax.numpy as jnp
from jax import lax
from jax.experimental import pallas as pl
from jax.experimental.pallas import tpu as pltpu


def _bipolar_lif_kernel(x_ref, out_ref, v_ref, *, alpha, theta_pos, theta_neg,
                        t_tile, feat):
    """Processes one (b, n) tile for a chunk of t_tile timesteps.

    x_ref   : (1, t_tile, n_tile, F)    input current chunk
    out_ref : (1, t_tile, n_tile, 2*F)  bipolar spike output chunk
    v_ref   : (1, n_tile, F)            membrane potential, persists across T chunks
    """
    t_chunk = pl.program_id(2)

    # Membrane potential starts at zero at the beginning of each (b, n) time sweep
    # (mirrors reset_state in the PyTorch module).
    @pl.when(t_chunk == 0)
    def _():
        v_ref[...] = jnp.zeros_like(v_ref)

    def step(i, v):
        # Leaky integration: V = alpha * V + I_t   (V carried in vregs)
        v = alpha * v + x_ref[:, i, :, :]

        # Dual-threshold spiking.
        # TODO(synk): SpikeFunction's forward is not defined in the source file;
        # standard surrogate-gradient forward (strict V > theta_pos / V < theta_neg)
        # is assumed, matching the previous version and the pure-JAX reference.
        pos = (v > theta_pos).astype(jnp.float32)
        neg = (v < theta_neg).astype(jnp.float32)

        # Lane-aligned slice stores of the two halves (no concatenate temporary).
        out_ref[:, i, :, :feat] = pos
        out_ref[:, i, :, feat:] = neg

        # Subtract-reset (reset_mode='subtract'), fused:
        #   V -= pos*theta_pos - neg*theta_neg   ==   V = V - pos*tp + neg*tn
        return v - pos * theta_pos + neg * theta_neg

    # Single scratch read at chunk entry, single write at chunk exit.
    v_ref[...] = lax.fori_loop(0, t_tile, step, v_ref[...], unroll=True)


def _pick_tile(dim, cap, multiple=1):
    """Largest divisor of `dim` that is <= cap and a multiple of `multiple`.
    Falls back to the full extent (always a legal block size)."""
    best = None
    for d in range(1, dim + 1):
        if dim % d == 0 and d <= cap and d % multiple == 0:
            best = d
    return best if best is not None else dim


def bipolar_lif_forward(input_current: jnp.ndarray,
                        tau_mem: float = 20.0,
                        theta_pos: float = 1.0,
                        theta_neg: float = -1.0,
                        dt: float = 1.0,
                        t_tile_cap: int = 16,
                        n_tile_cap: int = 512) -> jnp.ndarray:
    """Pallas implementation of BipolarLIFNeuron.forward (reset_mode='subtract').

    input_current: [B, T, N, F] float32
    returns      : [B, T, N, 2*F] float32
    """
    x = input_current.astype(jnp.float32)
    B, T, N, F = x.shape
    alpha = float(math.exp(-dt / tau_mem))
    tpos = abs(float(theta_pos))
    tneg = -abs(float(theta_neg))

    # --- tile selection --------------------------------------------------------
    # Budget the double-buffered input+output blocks (+ scratch) against ~20 MiB so
    # the kernel stays well inside v7x's 64 MiB physical VMEM and the 32 MiB scoped
    # limit we request below (also above v5e's 16 MiB default).
    t_tile = _pick_tile(T, min(t_tile_cap, T))
    vmem_budget = 20 * 1024 * 1024
    # per (t, n) cell: 4*F bytes in + 8*F bytes out, double-buffered; + 4*F scratch per n
    n_cap_budget = max(8, vmem_budget // (F * (24 * t_tile + 4)))
    n_tile = _pick_tile(N, min(n_tile_cap, n_cap_budget), multiple=8)

    grid = (B, N // n_tile, T // t_tile)

    kernel = functools.partial(
        _bipolar_lif_kernel, alpha=alpha, theta_pos=tpos, theta_neg=tneg,
        t_tile=t_tile, feat=F)

    elems = B * T * N * F
    cost = pl.CostEstimate(flops=8 * elems, transcendentals=0,
                           bytes_accessed=12 * elems)  # 4 B in + 8 B out per element

    return pl.pallas_call(
        kernel,
        out_shape=jax.ShapeDtypeStruct((B, T, N, 2 * F), jnp.float32),
        grid_spec=pltpu.PrefetchScalarGridSpec(
            num_scalar_prefetch=0,
            grid=grid,
            in_specs=[
                pl.BlockSpec((1, t_tile, n_tile, F),
                             lambda b, n, t: (b, t, n, 0)),
            ],
            out_specs=pl.BlockSpec((1, t_tile, n_tile, 2 * F),
                                   lambda b, n, t: (b, t, n, 0)),
            scratch_shapes=[pltpu.VMEM((1, n_tile, F), jnp.float32)],
        ),
        compiler_params=pltpu.CompilerParams(
            # B and N blocks are independent -> megacore-parallel; the time axis
            # carries membrane state -> must stay sequential (and innermost).
            dimension_semantics=("parallel", "parallel", "arbitrary"),
            vmem_limit_bytes=32 * 1024 * 1024),
        cost_estimate=cost,
    )(x)


def _reference_forward(x, tau_mem=20.0, theta_pos=1.0, theta_neg=-1.0, dt=1.0):
    """Pure-JAX reference (mirrors the PyTorch time loop) for correctness check."""
    B, T, N, F = x.shape
    alpha = jnp.exp(jnp.array(-dt / tau_mem, jnp.float32))
    tpos = jnp.abs(jnp.array(theta_pos, jnp.float32))
    tneg = -jnp.abs(jnp.array(theta_neg, jnp.float32))

    def step(v, x_t):
        v = alpha * v + x_t
        pos = (v > tpos).astype(jnp.float32)
        neg = (v < tneg).astype(jnp.float32)
        v = v - (pos * tpos - neg * tneg)
        return v, jnp.concatenate([pos, neg], axis=-1)

    v0 = jnp.zeros((B, N, F), jnp.float32)
    _, out = lax.scan(step, v0, jnp.moveaxis(x, 1, 0))  # [T, B, N, 2F]
    return jnp.moveaxis(out, 0, 1)


if __name__ == "__main__":
    # Small deterministic input consistent with the module's [B, T, N, F] convention.
    # T=32 with T_TILE=16 exercises the cross-chunk membrane carry; B=2 exercises
    # the parallel batch grid axis.
    B, T, N, F = 2, 32, 16, 128
    key = jax.random.PRNGKey(0)
    x = jax.random.normal(key, (B, T, N, F), dtype=jnp.float32) * 1.5

    out = bipolar_lif_forward(x)
    out = jax.block_until_ready(out)

    ref = _reference_forward(x)
    assert out.shape == (B, T, N, 2 * F), out.shape
    assert jnp.allclose(out, ref, atol=1e-5), "mismatch vs pure-JAX reference"

    print("KERNEL_OK")
</pallas_src>

<mosaic_0001>
module attributes {stable_mosaic.version = 11 : i64} {
  func.func @_bipolar_lif_kernel(%arg0: i32, %arg1: i32, %arg2: i32, %arg3: memref<1x16x16x128xf32, #tpu.memory_space<vmem>>, %arg4: memref<1x16x16x256xf32, #tpu.memory_space<vmem>>, %arg5: memref<1x16x128xf32, #tpu.memory_space<vmem>>) attributes {dimension_semantics = [#tpu.dimension_semantics<parallel>, #tpu.dimension_semantics<parallel>, #tpu.dimension_semantics<arbitrary>], iteration_bounds = array<i64: 2, 1, 2>, scalar_prefetch = 0 : i64, scratch_operands = 1 : i64, tpu.core_type = #tpu.core_type<tc>, window_params = [{transform_indices = @transform_0, window_bounds = array<i64: 1, 16, 16, 128>}, {transform_indices = @transform_1, window_bounds = array<i64: 1, 16, 16, 256>}]} {
    %c0_i32 = arith.constant 0 : i32
    %0 = arith.cmpi eq, %arg2, %c0_i32 : i32
    %1 = arith.extui %0 : i1 to i32
    %c0_i32_0 = arith.constant 0 : i32
    %2 = arith.cmpi ne, %1, %c0_i32_0 : i32
    scf.if %2 {
      %cst_229 = arith.constant 0.000000e+00 : f32
      %453 = vector.broadcast %cst_229 : f32 to vector<1x16x128xf32>
      %c0_230 = arith.constant 0 : index
      %c0_231 = arith.constant 0 : index
      %c0_232 = arith.constant 0 : index
      %454 = vector.load %arg5[%c0_230, %c0_231, %c0_232] : memref<1x16x128xf32, #tpu.memory_space<vmem>>, vector<1x16x128xf32>
      tpu.vector_store %arg5[%c0_230, %c0_231, %c0_232], %453 {strides = array<i32>} : memref<1x16x128xf32, #tpu.memory_space<vmem>>, vector<1x16x128xf32>,
    } else {
    }
    %c0 = arith.constant 0 : index
    %c0_1 = arith.constant 0 : index
    %c0_2 = arith.constant 0 : index
    %3 = vector.load %arg5[%c0, %c0_1, %c0_2] : memref<1x16x128xf32, #tpu.memory_space<vmem>>, vector<1x16x128xf32>
    %c0_i32_3 = arith.constant 0 : i32
    %cst = arith.constant 0.951229453 : f32
    %4 = vector.broadcast %cst : f32 to vector<1x16x128xf32>
    %5 = arith.mulf %4, %3 : vector<1x16x128xf32>
    %c0_4 = arith.constant 0 : index
    %6 = arith.index_cast %c0_i32_3 : i32 to index
    %c0_5 = arith.constant 0 : index
    %c0_6 = arith.constant 0 : index
    %7 = vector.load %arg3[%c0_4, %6, %c0_5, %c0_6] : memref<1x16x16x128xf32, #tpu.memory_space<vmem>>, vector<1x1x16x128xf32>
    %8 = vector.shape_cast %7 : vector<1x1x16x128xf32> to vector<1x16x128xf32>
    %9 = arith.addf %5, %8 : vector<1x16x128xf32>
    %cst_7 = arith.constant 1.000000e+00 : f32
    %10 = vector.broadcast %cst_7 : f32 to vector<1x16x128xf32>
    %11 = arith.cmpf ogt, %9, %10 : vector<1x16x128xf32>
    %12 = arith.extui %11 : vector<1x16x128xi1> to vector<1x16x128xi32>
    %13 = arith.sitofp %12 : vector<1x16x128xi32> to vector<1x16x128xf32>
    %cst_8 = arith.constant -1.000000e+00 : f32
    %14 = vector.broadcast %cst_8 : f32 to vector<1x16x128xf32>
    %15 = arith.cmpf olt, %9, %14 : vector<1x16x128xf32>
    %16 = arith.extui %15 : vector<1x16x128xi1> to vector<1x16x128xi32>
    %17 = arith.sitofp %16 : vector<1x16x128xi32> to vector<1x16x128xf32>
    %c0_9 = arith.constant 0 : index
    %18 = arith.index_cast %c0_i32_3 : i32 to index
    %c0_10 = arith.constant 0 : index
    %c0_11 = arith.constant 0 : index
    %19 = vector.load %arg4[%c0_9, %18, %c0_10, %c0_11] : memref<1x16x16x256xf32, #tpu.memory_space<vmem>>, vector<1x1x16x128xf32>
    %20 = vector.shape_cast %19 : vector<1x1x16x128xf32> to vector<1x16x128xf32>
    %21 = vector.shape_cast %13 : vector<1x16x128xf32> to vector<1x1x16x128xf32>
    tpu.vector_store %arg4[%c0_9, %18, %c0_10, %c0_11], %21 {strides = array<i32>} : memref<1x16x16x256xf32, #tpu.memory_space<vmem>>, vector<1x1x16x128xf32>,
    %c0_12 = arith.constant 0 : index
    %22 = arith.index_cast %c0_i32_3 : i32 to index
    %c0_13 = arith.constant 0 : index
    %c128 = arith.constant 128 : index
    %23 = vector.load %arg4[%c0_12, %22, %c0_13, %c128] : memref<1x16x16x256xf32, #tpu.memory_space<vmem>>, vector<1x1x16x128xf32>
    %24 = vector.shape_cast %23 : vector<1x1x16x128xf32> to vector<1x16x128xf32>
    %25 = vector.shape_cast %17 : vector<1x16x128xf32> to vector<1x1x16x128xf32>
    tpu.vector_store %arg4[%c0_12, %22, %c0_13, %c128], %25 {strides = array<i32>} : memref<1x16x16x256xf32, #tpu.memory_space<vmem>>, vector<1x1x16x128xf32>,
    %cst_14 = arith.constant 1.000000e+00 : f32
    %26 = vector.broadcast %cst_14 : f32 to vector<1x16x128xf32>
    %27 = arith.mulf %13, %26 : vector<1x16x128xf32>
    %28 = arith.subf %9, %27 : vector<1x16x128xf32>
    %cst_15 = arith.constant -1.000000e+00 : f32
    %29 = vector.broadcast %cst_15 : f32 to vector<1x16x128xf32>
    %30 = arith.mulf %17, %29 : vector<1x16x128xf32>
    %31 = arith.addf %28, %30 : vector<1x16x128xf32>
    %c1_i32 = arith.constant 1 : i32
    %cst_16 = arith.constant 0.951229453 : f32
    %32 = vector.broadcast %cst_16 : f32 to vector<1x16x128xf32>
    %33 = arith.mulf %32, %31 : vector<1x16x128xf32>
    %c0_17 = arith.constant 0 : index
    %34 = arith.index_cast %c1_i32 : i32 to index
    %c0_18 = arith.constant 0 : index
    %c0_19 = arith.constant 0 : index
    %35 = vector.load %arg3[%c0_17, %34, %c0_18, %c0_19] : memref<1x16x16x128xf32, #tpu.memory_space<vmem>>, vector<1x1x16x128xf32>
    %36 = vector.shape_cast %35 : vector<1x1x16x128xf32> to vector<1x16x128xf32>
    %37 = arith.addf %33, %36 : vector<1x16x128xf32>
    %cst_20 = arith.constant 1.000000e+00 : f32
    %38 = vector.broadcast %cst_20 : f32 to vector<1x16x128xf32>
    %39 = arith.cmpf ogt, %37, %38 : vector<1x16x128xf32>
    %40 = arith.extui %39 : vector<1x16x128xi1> to vector<1x16x128xi32>
    %41 = arith.sitofp %40 : vector<1x16x128xi32> to vector<1x16x128xf32>
    %cst_21 = arith.constant -1.000000e+00 : f32
    %42 = vector.broadcast %cst_21 : f32 to vector<1x16x128xf32>
    %43 = arith.cmpf olt, %37, %42 : vector<1x16x128xf32>
    %44 = arith.extui %43 : vector<1x16x128xi1> to vector<1x16x128xi32>
    %45 = arith.sitofp %44 : vector<1x16x128xi32> to vector<1x16x128xf32>
    %c0_22 = arith.constant 0 : index
    %46 = arith.index_cast %c1_i32 : i32 to index
    %c0_23 = arith.constant 0 : index
    %c0_24 = arith.constant 0 : index
    %47 = vector.load %arg4[%c0_22, %46, %c0_23, %c0_24] : memref<1x16x16x256xf32, #tpu.memory_space<vmem>>, vector<1x1x16x128xf32>
    %48 = vector.shape_cast %47 : vector<1x1x16x128xf32> to vector<1x16x128xf32>
    %49 = vector.shape_cast %41 : vector<1x16x128xf32> to vector<1x1x16x128xf32>
    tpu.vector_store %arg4[%c0_22, %46, %c0_23, %c0_24], %49 {strides = array<i32>} : memref<1x16x16x256xf32, #tpu.memory_space<vmem>>, vector<1x1x16x128xf32>,
    %c0_25 = arith.constant 0 : index
    %50 = arith.index_cast %c1_i32 : i32 to index
    %c0_26 = arith.constant 0 : index
    %c128_27 = arith.constant 128 : index
    %51 = vector.load %arg4[%c0_25, %50, %c0_26, %c128_27] : memref<1x16x16x256xf32, #tpu.memory_space<vmem>>, vector<1x1x16x128xf32>
    %52 = vector.shape_cast %51 : vector<1x1x16x128xf32> to vector<1x16x128xf32>
    %53 = vector.shape_cast %45 : vector<1x16x128xf32> to vector<1x1x16x128xf32>
    tpu.vector_store %arg4[%c0_25, %50, %c0_26, %c128_27], %53 {strides = array<i32>} : memref<1x16x16x256xf32, #tpu.memory_space<vmem>>, vector<1x1x16x128xf32>,
    %cst_28 = arith.constant 1.000000e+00 : f32
    %54 = vector.broadcast %cst_28 : f32 to vector<1x16x128xf32>
    %55 = arith.mulf %41, %54 : vector<1x16x128xf32>
    %56 = arith.subf %37, %55 : vector<1x16x128xf32>
    %cst_29 = arith.constant -1.000000e+00 : f32
    %57 = vector.broadcast %cst_29 : f32 to vector<1x16x128xf32>
    %58 = arith.mulf %45, %57 : vector<1x16x128xf32>
    %59 = arith.addf %56, %58 : vector<1x16x128xf32>
    %c2_i32 = arith.constant 2 : i32
    %cst_30 = arith.constant 0.951229453 : f32
    %60 = vector.broadcast %cst_30 : f32 to vector<1x16x128xf32>
    %61 = arith.mulf %60, %59 : vector<1x16x128xf32>
    %c0_31 = arith.constant 0 : index
    %62 = arith.index_cast %c2_i32 : i32 to index
    %c0_32 = arith.constant 0 : index
    %c0_33 = arith.constant 0 : index
    %63 = vector.load %arg3[%c0_31, %62, %c0_32, %c0_33] : memref<1x16x16x128xf32, #tpu.memory_space<vmem>>, vector<1x1x16x128xf32>
    %64 = vector.shape_cast %63 : vector<1x1x16x128xf32> to vector<1x16x128xf32>
    %65 = arith.addf %61, %64 : vector<1x16x128xf32>
    %cst_34 = arith.constant 1.000000e+00 : f32
    %66 = vector.broadcast %cst_34 : f32 to vector<1x16x128xf32>
    %67 = arith.cmpf ogt, %65, %66 : vector<1x16x128xf32>
    %68 = arith.extui %67 : vector<1x16x128xi1> to vector<1x16x128xi32>
    %69 = arith.sitofp %68 : vector<1x16x128xi32> to vector<1x16x128xf32>
    %cst_35 = arith.constant -1.000000e+00 : f32
    %70 = vector.broadcast %cst_35 : f32 to vector<1x16x128xf32>
    %71 = arith.cmpf olt, %65, %70 : vector<1x16x128xf32>
    %72 = arith.extui %71 : vector<1x16x128xi1> to vector<1x16x128xi32>
    %73 = arith.sitofp %72 : vector<1x16x128xi32> to vector<1x16x128xf32>
    %c0_36 = arith.constant 0 : index
    %74 = arith.index_cast %c2_i32 : i32 to index
    %c0_37 = arith.constant 0 : index
    %c0_38 = arith.constant 0 : index
    %75 = vector.load %arg4[%c0_36, %74, %c0_37, %c0_38] : memref<1x16x16x256xf32, #tpu.memory_space<vmem>>, vector<1x1x16x128xf32>
    %76 = vector.shape_cast %75 : vector<1x1x16x128xf32> to vector<1x16x128xf32>
    %77 = vector.shape_cast %69 : vector<1x16x128xf32> to vector<1x1x16x128xf32>
    tpu.vector_store %arg4[%c0_36, %74, %c0_37, %c0_38], %77 {strides = array<i32>} : memref<1x16x16x256xf32, #tpu.memory_space<vmem>>, vector<1x1x16x128xf32>,
    %c0_39 = arith.constant 0 : index
    %78 = arith.index_cast %c2_i32 : i32 to index
    %c0_40 = arith.constant 0 : index
    %c128_41 = arith.constant 128 : index
    %79 = vector.load %arg4[%c0_39, %78, %c0_40, %c128_41] : memref<1x16x16x256xf32, #tpu.memory_space<vmem>>, vector<1x1x16x128xf32>
    %80 = vector.shape_cast %79 : vector<1x1x16x128xf32> to vector<1x16x128xf32>
    %81 = vector.shape_cast %73 : vector<1x16x128xf32> to vector<1x1x16x128xf32>
    tpu.vector_store %arg4[%c0_39, %78, %c0_40, %c128_41], %81 {strides = array<i32>} : memref<1x16x16x256xf32, #tpu.memory_space<vmem>>, vector<1x1x16x128xf32>,
    %cst_42 = arith.constant 1.000000e+00 : f32
    %82 = vector.broadcast %cst_42 : f32 to vector<1x16x128xf32>
    %83 = arith.mulf %69, %82 : vector<1x16x128xf32>
    %84 = arith.subf %65, %83 : vector<1x16x128xf32>
    %cst_43 = arith.constant -1.000000e+00 : f32
    %85 = vector.broadcast %cst_43 : f32 to vector<1x16x128xf32>
    %86 = arith.mulf %73, %85 : vector<1x16x128xf32>
    %87 = arith.addf %84, %86 : vector<1x16x128xf32>
    %c3_i32 = arith.constant 3 : i32
    %cst_44 = arith.constant 0.951229453 : f32
    %88 = vector.broadcast %cst_44 : f32 to vector<1x16x128xf32>
    %89 = arith.mulf %88, %87 : vector<1x16x128xf32>
    %c0_45 = arith.constant 0 : index
    %90 = arith.index_cast %c3_i32 : i32 to index
    %c0_46 = arith.constant 0 : index
    %c0_47 = arith.constant 0 : index
    %91 = vector.load %arg3[%c0_45, %90, %c0_46, %c0_47] : memref<1x16x16x128xf32, #tpu.memory_space<vmem>>, vector<1x1x16x128xf32>
    %92 = vector.shape_cast %91 : vector<1x1x16x128xf32> to vector<1x16x128xf32>
    %93 = arith.addf %89, %92 : vector<1x16x128xf32>
    %cst_48 = arith.constant 1.000000e+00 : f32
    %94 = vector.broadcast %cst_48 : f32 to vector<1x16x128xf32>
    %95 = arith.cmpf ogt, %93, %94 : vector<1x16x128xf32>
    %96 = arith.extui %95 : vector<1x16x128xi1> to vector<1x16x128xi32>
    %97 = arith.sitofp %96 : vector<1x16x128xi32> to vector<1x16x128xf32>
    %cst_49 = arith.constant -1.000000e+00 : f32
    %98 = vector.broadcast %cst_49 : f32 to vector<1x16x128xf32>
    %99 = arith.cmpf olt, %93, %98 : vector<1x16x128xf32>
    %100 = arith.extui %99 : vector<1x16x128xi1> to vector<1x16x128xi32>
    %101 = arith.sitofp %100 : vector<1x16x128xi32> to vector<1x16x128xf32>
    %c0_50 = arith.constant 0 : index
    %102 = arith.index_cast %c3_i32 : i32 to index
    %c0_51 = arith.constant 0 : index
    %c0_52 = arith.constant 0 : index
    %103 = vector.load %arg4[%c0_50, %102, %c0_51, %c0_52] : memref<1x16x16x256xf32, #tpu.memory_space<vmem>>, vector<1x1x16x128xf32>
    %104 = vector.shape_cast %103 : vector<1x1x16x128xf32> to vector<1x16x128xf32>
    %105 = vector.shape_cast %97 : vector<1x16x128xf32> to vector<1x1x16x128xf32>
    tpu.vector_store %arg4[%c0_50, %102, %c0_51, %c0_52], %105 {strides = array<i32>} : memref<1x16x16x256xf32, #tpu.memory_space<vmem>>, vector<1x1x16x128xf32>,
    %c0_53 = arith.constant 0 : index
    %106 = arith.index_cast %c3_i32 : i32 to index
    %c0_54 = arith.constant 0 : index
    %c128_55 = arith.constant 128 : index
    %107 = vector.load %arg4[%c0_53, %106, %c0_54, %c128_55] : memref<1x16x16x256xf32, #tpu.memory_space<vmem>>, vector<1x1x16x128xf32>
    %108 = vector.shape_cast %107 : vector<1x1x16x128xf32> to vector<1x16x128xf32>
    %109 = vector.shape_cast %101 : vector<1x16x128xf32> to vector<1x1x16x128xf32>
    tpu.vector_store %arg4[%c0_53, %106, %c0_54, %c128_55], %109 {strides = array<i32>} : memref<1x16x16x256xf32, #tpu.memory_space<vmem>>, vector<1x1x16x128xf32>,
    %cst_56 = arith.constant 1.000000e+00 : f32
    %110 = vector.broadcast %cst_56 : f32 to vector<1x16x128xf32>
    %111 = arith.mulf %97, %110 : vector<1x16x128xf32>
    %112 = arith.subf %93, %111 : vector<1x16x128xf32>
    %cst_57 = arith.constant -1.000000e+00 : f32
    %113 = vector.broadcast %cst_57 : f32 to vector<1x16x128xf32>
    %114 = arith.mulf %101, %113 : vector<1x16x128xf32>
    %115 = arith.addf %112, %114 : vector<1x16x128xf32>
    %c4_i32 = arith.constant 4 : i32
    %cst_58 = arith.constant 0.951229453 : f32
    %116 = vector.broadcast %cst_58 : f32 to vector<1x16x128xf32>
    %117 = arith.mulf %116, %115 : vector<1x16x128xf32>
    %c0_59 = arith.constant 0 : index
    %118 = arith.index_cast %c4_i32 : i32 to index
    %c0_60 = arith.constant 0 : index
    %c0_61 = arith.constant 0 : index
    %119 = vector.load %arg3[%c0_59, %118, %c0_60, %c0_61] : memref<1x16x16x128xf32, #tpu.memory_space<vmem>>, vector<1x1x16x128xf32>
    %120 = vector.shape_cast %119 : vector<1x1x16x128xf32> to vector<1x16x128xf32>
    %121 = arith.addf %117, %120 : vector<1x16x128xf32>
    %cst_62 = arith.constant 1.000000e+00 : f32
    %122 = vector.broadcast %cst_62 : f32 to vector<1x16x128xf32>
    %123 = arith.cmpf ogt, %121, %122 : vector<1x16x128xf32>
    %124 = arith.extui %123 : vector<1x16x128xi1> to vector<1x16x128xi32>
    %125 = arith.sitofp %124 : vector<1x16x128xi32> to vector<1x16x128xf32>
    %cst_63 = arith.constant -1.000000e+00 : f32
    %126 = vector.broadcast %cst_63 : f32 to vector<1x16x128xf32>
    %127 = arith.cmpf olt, %121, %126 : vector<1x16x128xf32>
    %128 = arith.extui %127 : vector<1x16x128xi1> to vector<1x16x128xi32>
    %129 = arith.sitofp %128 : vector<1x16x128xi32> to vector<1x16x128xf32>
    %c0_64 = arith.constant 0 : index
    %130 = arith.index_cast %c4_i32 : i32 to index
    %c0_65 = arith.constant 0 : index
    %c0_66 = arith.constant 0 : index
    %131 = vector.load %arg4[%c0_64, %130, %c0_65, %c0_66] : memref<1x16x16x256xf32, #tpu.memory_space<vmem>>, vector<1x1x16x128xf32>
    %132 = vector.shape_cast %131 : vector<1x1x16x128xf32> to vector<1x16x128xf32>
    %133 = vector.shape_cast %125 : vector<1x16x128xf32> to vector<1x1x16x128xf32>
    tpu.vector_store %arg4[%c0_64, %130, %c0_65, %c0_66], %133 {strides = array<i32>} : memref<1x16x16x256xf32, #tpu.memory_space<vmem>>, vector<1x1x16x128xf32>,
    %c0_67 = arith.constant 0 : index
    %134 = arith.index_cast %c4_i32 : i32 to index
    %c0_68 = arith.constant 0 : index
    %c128_69 = arith.constant 128 : index
    %135 = vector.load %arg4[%c0_67, %134, %c0_68, %c128_69] : memref<1x16x16x256xf32, #tpu.memory_space<vmem>>, vector<1x1x16x128xf32>
    %136 = vector.shape_cast %135 : vector<1x1x16x128xf32> to vector<1x16x128xf32>
    %137 = vector.shape_cast %129 : vector<1x16x128xf32> to vector<1x1x16x128xf32>
    tpu.vector_store %arg4[%c0_67, %134, %c0_68, %c128_69], %137 {strides = array<i32>} : memref<1x16x16x256xf32, #tpu.memory_space<vmem>>, vector<1x1x16x128xf32>,
    %cst_70 = arith.constant 1.000000e+00 : f32
    %138 = vector.broadcast %cst_70 : f32 to vector<1x16x128xf32>
    %139 = arith.mulf %125, %138 : vector<1x16x128xf32>
    %140 = arith.subf %121, %139 : vector<1x16x128xf32>
    %cst_71 = arith.constant -1.000000e+00 : f32
    %141 = vector.broadcast %cst_71 : f32 to vector<1x16x128xf32>
    %142 = arith.mulf %129, %141 : vector<1x16x128xf32>
    %143 = arith.addf %140, %142 : vector<1x16x128xf32>
    %c5_i32 = arith.constant 5 : i32
    %cst_72 = arith.constant 0.951229453 : f32
    %144 = vector.broadcast %cst_72 : f32 to vector<1x16x128xf32>
    %145 = arith.mulf %144, %143 : vector<1x16x128xf32>
    %c0_73 = arith.constant 0 : index
    %146 = arith.index_cast %c5_i32 : i32 to index
    %c0_74 = arith.constant 0 : index
    %c0_75 = arith.constant 0 : index
    %147 = vector.load %arg3[%c0_73, %146, %c0_74, %c0_75] : memref<1x16x16x128xf32, #tpu.memory_space<vmem>>, vector<1x1x16x128xf32>
    %148 = vector.shape_cast %147 : vector<1x1x16x128xf32> to vector<1x16x128xf32>
    %149 = arith.addf %145, %148 : vector<1x16x128xf32>
    %cst_76 = arith.constant 1.000000e+00 : f32
    %150 = vector.broadcast %cst_76 : f32 to vector<1x16x128xf32>
    %151 = arith.cmpf ogt, %149, %150 : vector<1x16x128xf32>
    %152 = arith.extui %151 : vector<1x16x128xi1> to vector<1x16x128xi32>
    %153 = arith.sitofp %152 : vector<1x16x128xi32> to vector<1x16x128xf32>
    %cst_77 = arith.constant -1.000000e+00 : f32
    %154 = vector.broadcast %cst_77 : f32 to vector<1x16x128xf32>
    %155 = arith.cmpf olt, %149, %154 : vector<1x16x128xf32>
    %156 = arith.extui %155 : vector<1x16x128xi1> to vector<1x16x128xi32>
    %157 = arith.sitofp %156 : vector<1x16x128xi32> to vector<1x16x128xf32>
    %c0_78 = arith.constant 0 : index
    %158 = arith.index_cast %c5_i32 : i32 to index
    %c0_79 = arith.constant 0 : index
    %c0_80 = arith.constant 0 : index
    %159 = vector.load %arg4[%c0_78, %158, %c0_79, %c0_80] : memref<1x16x16x256xf32, #tpu.memory_space<vmem>>, vector<1x1x16x128xf32>
    %160 = vector.shape_cast %159 : vector<1x1x16x128xf32> to vector<1x16x128xf32>
    %161 = vector.shape_cast %153 : vector<1x16x128xf32> to vector<1x1x16x128xf32>
    tpu.vector_store %arg4[%c0_78, %158, %c0_79, %c0_80], %161 {strides = array<i32>} : memref<1x16x16x256xf32, #tpu.memory_space<vmem>>, vector<1x1x16x128xf32>,
    %c0_81 = arith.constant 0 : index
    %162 = arith.index_cast %c5_i32 : i32 to index
    %c0_82 = arith.constant 0 : index
    %c128_83 = arith.constant 128 : index
    %163 = vector.load %arg4[%c0_81, %162, %c0_82, %c128_83] : memref<1x16x16x256xf32, #tpu.memory_space<vmem>>, vector<1x1x16x128xf32>
    %164 = vector.shape_cast %163 : vector<1x1x16x128xf32> to vector<1x16x128xf32>
    %165 = vector.shape_cast %157 : vector<1x16x128xf32> to vector<1x1x16x128xf32>
    tpu.vector_store %arg4[%c0_81, %162, %c0_82, %c128_83], %165 {strides = array<i32>} : memref<1x16x16x256xf32, #tpu.memory_space<vmem>>, vector<1x1x16x128xf32>,
    %cst_84 = arith.constant 1.000000e+00 : f32
    %166 = vector.broadcast %cst_84 : f32 to vector<1x16x128xf32>
    %167 = arith.mulf %153, %166 : vector<1x16x128xf32>
    %168 = arith.subf %149, %167 : vector<1x16x128xf32>
    %cst_85 = arith.constant -1.000000e+00 : f32
    %169 = vector.broadcast %cst_85 : f32 to vector<1x16x128xf32>
    %170 = arith.mulf %157, %169 : vector<1x16x128xf32>
    %171 = arith.addf %168, %170 : vector<1x16x128xf32>
    %c6_i32 = arith.constant 6 : i32
    %cst_86 = arith.constant 0.951229453 : f32
    %172 = vector.broadcast %cst_86 : f32 to vector<1x16x128xf32>
    %173 = arith.mulf %172, %171 : vector<1x16x128xf32>
    %c0_87 = arith.constant 0 : index
    %174 = arith.index_cast %c6_i32 : i32 to index
    %c0_88 = arith.constant 0 : index
    %c0_89 = arith.constant 0 : index
    %175 = vector.load %arg3[%c0_87, %174, %c0_88, %c0_89] : memref<1x16x16x128xf32, #tpu.memory_space<vmem>>, vector<1x1x16x128xf32>
    %176 = vector.shape_cast %175 : vector<1x1x16x128xf32> to vector<1x16x128xf32>
    %177 = arith.addf %173, %176 : vector<1x16x128xf32>
    %cst_90 = arith.constant 1.000000e+00 : f32
    %178 = vector.broadcast %cst_90 : f32 to vector<1x16x128xf32>
    %179 = arith.cmpf ogt, %177, %178 : vector<1x16x128xf32>
    %180 = arith.extui %179 : vector<1x16x128xi1> to vector<1x16x128xi32>
    %181 = arith.sitofp %180 : vector<1x16x128xi32> to vector<1x16x128xf32>
    %cst_91 = arith.constant -1.000000e+00 : f32
    %182 = vector.broadcast %cst_91 : f32 to vector<1x16x128xf32>
    %183 = arith.cmpf olt, %177, %182 : vector<1x16x128xf32>
    %184 = arith.extui %183 : vector<1x16x128xi1> to vector<1x16x128xi32>
    %185 = arith.sitofp %184 : vector<1x16x128xi32> to vector<1x16x128xf32>
    %c0_92 = arith.constant 0 : index
    %186 = arith.index_cast %c6_i32 : i32 to index
    %c0_93 = arith.constant 0 : index
    %c0_94 = arith.constant 0 : index
    %187 = vector.load %arg4[%c0_92, %186, %c0_93, %c0_94] : memref<1x16x16x256xf32, #tpu.memory_space<vmem>>, vector<1x1x16x128xf32>
    %188 = vector.shape_cast %187 : vector<1x1x16x128xf32> to vector<1x16x128xf32>
    %189 = vector.shape_cast %181 : vector<1x16x128xf32> to vector<1x1x16x128xf32>
    tpu.vector_store %arg4[%c0_92, %186, %c0_93, %c0_94], %189 {strides = array<i32>} : memref<1x16x16x256xf32, #tpu.memory_space<vmem>>, vector<1x1x16x128xf32>,
    %c0_95 = arith.constant 0 : index
    %190 = arith.index_cast %c6_i32 : i32 to index
    %c0_96 = arith.constant 0 : index
    %c128_97 = arith.constant 128 : index
    %191 = vector.load %arg4[%c0_95, %190, %c0_96, %c128_97] : memref<1x16x16x256xf32, #tpu.memory_space<vmem>>, vector<1x1x16x128xf32>
    %192 = vector.shape_cast %191 : vector<1x1x16x128xf32> to vector<1x16x128xf32>
    %193 = vector.shape_cast %185 : vector<1x16x128xf32> to vector<1x1x16x128xf32>
    tpu.vector_store %arg4[%c0_95, %190, %c0_96, %c128_97], %193 {strides = array<i32>} : memref<1x16x16x256xf32, #tpu.memory_space<vmem>>, vector<1x1x16x128xf32>,
    %cst_98 = arith.constant 1.000000e+00 : f32
    %194 = vector.broadcast %cst_98 : f32 to vector<1x16x128xf32>
    %195 = arith.mulf %181, %194 : vector<1x16x128xf32>
    %196 = arith.subf %177, %195 : vector<1x16x128xf32>
    %cst_99 = arith.constant -1.000000e+00 : f32
    %197 = vector.broadcast %cst_99 : f32 to vector<1x16x128xf32>
    %198 = arith.mulf %185, %197 : vector<1x16x128xf32>
    %199 = arith.addf %196, %198 : vector<1x16x128xf32>
    %c7_i32 = arith.constant 7 : i32
    %cst_100 = arith.constant 0.951229453 : f32
    %200 = vector.broadcast %cst_100 : f32 to vector<1x16x128xf32>
    %201 = arith.mulf %200, %199 : vector<1x16x128xf32>
    %c0_101 = arith.constant 0 : index
    %202 = arith.index_cast %c7_i32 : i32 to index
    %c0_102 = arith.constant 0 : index
    %c0_103 = arith.constant 0 : index
    %203 = vector.load %arg3[%c0_101, %202, %c0_102, %c0_103] : memref<1x16x16x128xf32, #tpu.memory_space<vmem>>, vector<1x1x16x128xf32>
    %204 = vector.shape_cast %203 : vector<1x1x16x128xf32> to vector<1x16x128xf32>
    %205 = arith.addf %201, %204 : vector<1x16x128xf32>
    %cst_104 = arith.constant 1.000000e+00 : f32
    %206 = vector.broadcast %cst_104 : f32 to vector<1x16x128xf32>
    %207 = arith.cmpf ogt, %205, %206 : vector<1x16x128xf32>
    %208 = arith.extui %207 : vector<1x16x128xi1> to vector<1x16x128xi32>
    %209 = arith.sitofp %208 : vector<1x16x128xi32> to vector<1x16x128xf32>
    %cst_105 = arith.constant -1.000000e+00 : f32
    %210 = vector.broadcast %cst_105 : f32 to vector<1x16x128xf32>
    %211 = arith.cmpf olt, %205, %210 : vector<1x16x128xf32>
    %212 = arith.extui %211 : vector<1x16x128xi1> to vector<1x16x128xi32>
    %213 = arith.sitofp %212 : vector<1x16x128xi32> to vector<1x16x128xf32>
    %c0_106 = arith.constant 0 : index
    %214 = arith.index_cast %c7_i32 : i32 to index
    %c0_107 = arith.constant 0 : index
    %c0_108 = arith.constant 0 : index
    %215 = vector.load %arg4[%c0_106, %214, %c0_107, %c0_108] : memref<1x16x16x256xf32, #tpu.memory_space<vmem>>, vector<1x1x16x128xf32>
    %216 = vector.shape_cast %215 : vector<1x1x16x128xf32> to vector<1x16x128xf32>
    %217 = vector.shape_cast %209 : vector<1x16x128xf32> to vector<1x1x16x128xf32>
    tpu.vector_store %arg4[%c0_106, %214, %c0_107, %c0_108], %217 {strides = array<i32>} : memref<1x16x16x256xf32, #tpu.memory_space<vmem>>, vector<1x1x16x128xf32>,
    %c0_109 = arith.constant 0 : index
    %218 = arith.index_cast %c7_i32 : i32 to index
    %c0_110 = arith.constant 0 : index
    %c128_111 = arith.constant 128 : index
    %219 = vector.load %arg4[%c0_109, %218, %c0_110, %c128_111] : memref<1x16x16x256xf32, #tpu.memory_space<vmem>>, vector<1x1x16x128xf32>
    %220 = vector.shape_cast %219 : vector<1x1x16x128xf32> to vector<1x16x128xf32>
    %221 = vector.shape_cast %213 : vector<1x16x128xf32> to vector<1x1x16x128xf32>
    tpu.vector_store %arg4[%c0_109, %218, %c0_110, %c128_111], %221 {strides = array<i32>} : memref<1x16x16x256xf32, #tpu.memory_space<vmem>>, vector<1x1x16x128xf32>,
    %cst_112 = arith.constant 1.000000e+00 : f32
    %222 = vector.broadcast %cst_112 : f32 to vector<1x16x128xf32>
    %223 = arith.mulf %209, %222 : vector<1x16x128xf32>
    %224 = arith.subf %205, %223 : vector<1x16x128xf32>
    %cst_113 = arith.constant -1.000000e+00 : f32
    %225 = vector.broadcast %cst_113 : f32 to vector<1x16x128xf32>
    %226 = arith.mulf %213, %225 : vector<1x16x128xf32>
    %227 = arith.addf %224, %226 : vector<1x16x128xf32>
    %c8_i32 = arith.constant 8 : i32
    %cst_114 = arith.constant 0.951229453 : f32
    %228 = vector.broadcast %cst_114 : f32 to vector<1x16x128xf32>
    %229 = arith.mulf %228, %227 : vector<1x16x128xf32>
    %c0_115 = arith.constant 0 : index
    %230 = arith.index_cast %c8_i32 : i32 to index
    %c0_116 = arith.constant 0 : index
    %c0_117 = arith.constant 0 : index
    %231 = vector.load %arg3[%c0_115, %230, %c0_116, %c0_117] : memref<1x16x16x128xf32, #tpu.memory_space<vmem>>, vector<1x1x16x128xf32>
    %232 = vector.shape_cast %231 : vector<1x1x16x128xf32> to vector<1x16x128xf32>
    %233 = arith.addf %229, %232 : vector<1x16x128xf32>
    %cst_118 = arith.constant 1.000000e+00 : f32
    %234 = vector.broadcast %cst_118 : f32 to vector<1x16x128xf32>
    %235 = arith.cmpf ogt, %233, %234 : vector<1x16x128xf32>
    %236 = arith.extui %235 : vector<1x16x128xi1> to vector<1x16x128xi32>
    %237 = arith.sitofp %236 : vector<1x16x128xi32> to vector<1x16x128xf32>
    %cst_119 = arith.constant -1.000000e+00 : f32
    %238 = vector.broadcast %cst_119 : f32 to vector<1x16x128xf32>
    %239 = arith.cmpf olt, %233, %238 : vector<1x16x128xf32>
    %240 = arith.extui %239 : vector<1x16x128xi1> to vector<1x16x128xi32>
    %241 = arith.sitofp %240 : vector<1x16x128xi32> to vector<1x16x128xf32>
    %c0_120 = arith.constant 0 : index
    %242 = arith.index_cast %c8_i32 : i32 to index
    %c0_121 = arith.constant 0 : index
    %c0_122 = arith.constant 0 : index
    %243 = vector.load %arg4[%c0_120, %242, %c0_121, %c0_122] : memref<1x16x16x256xf32, #tpu.memory_space<vmem>>, vector<1x1x16x128xf32>
    %244 = vector.shape_cast %243 : vector<1x1x16x128xf32> to vector<1x16x128xf32>
    %245 = vector.shape_cast %237 : vector<1x16x128xf32> to vector<1x1x16x128xf32>
    tpu.vector_store %arg4[%c0_120, %242, %c0_121, %c0_122], %245 {strides = array<i32>} : memref<1x16x16x256xf32, #tpu.memory_space<vmem>>, vector<1x1x16x128xf32>,
    %c0_123 = arith.constant 0 : index
    %246 = arith.index_cast %c8_i32 : i32 to index
    %c0_124 = arith.constant 0 : index
    %c128_125 = arith.constant 128 : index
    %247 = vector.load %arg4[%c0_123, %246, %c0_124, %c128_125] : memref<1x16x16x256xf32, #tpu.memory_space<vmem>>, vector<1x1x16x128xf32>
    %248 = vector.shape_cast %247 : vector<1x1x16x128xf32> to vector<1x16x128xf32>
    %249 = vector.shape_cast %241 : vector<1x16x128xf32> to vector<1x1x16x128xf32>
    tpu.vector_store %arg4[%c0_123, %246, %c0_124, %c128_125], %249 {strides = array<i32>} : memref<1x16x16x256xf32, #tpu.memory_space<vmem>>, vector<1x1x16x128xf32>,
    %cst_126 = arith.constant 1.000000e+00 : f32
    %250 = vector.broadcast %cst_126 : f32 to vector<1x16x128xf32>
    %251 = arith.mulf %237, %250 : vector<1x16x128xf32>
    %252 = arith.subf %233, %251 : vector<1x16x128xf32>
    %cst_127 = arith.constant -1.000000e+00 : f32
    %253 = vector.broadcast %cst_127 : f32 to vector<1x16x128xf32>
    %254 = arith.mulf %241, %253 : vector<1x16x128xf32>
    %255 = arith.addf %252, %254 : vector<1x16x128xf32>
    %c9_i32 = arith.constant 9 : i32
    %cst_128 = arith.constant 0.951229453 : f32
    %256 = vector.broadcast %cst_128 : f32 to vector<1x16x128xf32>
    %257 = arith.mulf %256, %255 : vector<1x16x128xf32>
    %c0_129 = arith.constant 0 : index
    %258 = arith.index_cast %c9_i32 : i32 to index
    %c0_130 = arith.constant 0 : index
    %c0_131 = arith.constant 0 : index
    %259 = vector.load %arg3[%c0_129, %258, %c0_130, %c0_131] : memref<1x16x16x128xf32, #tpu.memory_space<vmem>>, vector<1x1x16x128xf32>
    %260 = vector.shape_cast %259 : vector<1x1x16x128xf32> to vector<1x16x128xf32>
    %261 = arith.addf %257, %260 : vector<1x16x128xf32>
    %cst_132 = arith.constant 1.000000e+00 : f32
    %262 = vector.broadcast %cst_132 : f32 to vector<1x16x128xf32>
    %263 = arith.cmpf ogt, %261, %262 : vector<1x16x128xf32>
    %264 = arith.extui %263 : vector<1x16x128xi1> to vector<1x16x128xi32>
    %265 = arith.sitofp %264 : vector<1x16x128xi32> to vector<1x16x128xf32>
    %cst_133 = arith.constant -1.000000e+00 : f32
    %266 = vector.broadcast %cst_133 : f32 to vector<1x16x128xf32>
    %267 = arith.cmpf olt, %261, %266 : vector<1x16x128xf32>
    %268 = arith.extui %267 : vector<1x16x128xi1> to vector<1x16x128xi32>
    %269 = arith.sitofp %268 : vector<1x16x128xi32> to vector<1x16x128xf32>
    %c0_134 = arith.constant 0 : index
    %270 = arith.index_cast %c9_i32 : i32 to index
    %c0_135 = arith.constant 0 : index
    %c0_136 = arith.constant 0 : index
    %271 = vector.load %arg4[%c0_134, %270, %c0_135, %c0_136] : memref<1x16x16x256xf32, #tpu.memory_space<vmem>>, vector<1x1x16x128xf32>
    %272 = vector.shape_cast %271 : vector<1x1x16x128xf32> to vector<1x16x128xf32>
    %273 = vector.shape_cast %265 : vector<1x16x128xf32> to vector<1x1x16x128xf32>
    tpu.vector_store %arg4[%c0_134, %270, %c0_135, %c0_136], %273 {strides = array<i32>} : memref<1x16x16x256xf32, #tpu.memory_space<vmem>>, vector<1x1x16x128xf32>,
    %c0_137 = arith.constant 0 : index
    %274 = arith.index_cast %c9_i32 : i32 to index
    %c0_138 = arith.constant 0 : index
    %c128_139 = arith.constant 128 : index
    %275 = vector.load %arg4[%c0_137, %274, %c0_138, %c128_139] : memref<1x16x16x256xf32, #tpu.memory_space<vmem>>, vector<1x1x16x128xf32>
    %276 = vector.shape_cast %275 : vector<1x1x16x128xf32> to vector<1x16x128xf32>
    %277 = vector.shape_cast %269 : vector<1x16x128xf32> to vector<1x1x16x128xf32>
    tpu.vector_store %arg4[%c0_137, %274, %c0_138, %c128_139], %277 {strides = array<i32>} : memref<1x16x16x256xf32, #tpu.memory_space<vmem>>, vector<1x1x16x128xf32>,
    %cst_140 = arith.constant 1.000000e+00 : f32
    %278 = vector.broadcast %cst_140 : f32 to vector<1x16x128xf32>
    %279 = arith.mulf %265, %278 : vector<1x16x128xf32>
    %280 = arith.subf %261, %279 : vector<1x16x128xf32>
    %cst_141 = arith.constant -1.000000e+00 : f32
    %281 = vector.broadcast %cst_141 : f32 to vector<1x16x128xf32>
    %282 = arith.mulf %269, %281 : vector<1x16x128xf32>
    %283 = arith.addf %280, %282 : vector<1x16x128xf32>
    %c10_i32 = arith.constant 10 : i32
    %cst_142 = arith.constant 0.951229453 : f32
    %284 = vector.broadcast %cst_142 : f32 to vector<1x16x128xf32>
    %285 = arith.mulf %284, %283 : vector<1x16x128xf32>
    %c0_143 = arith.constant 0 : index
    %286 = arith.index_cast %c10_i32 : i32 to index
    %c0_144 = arith.constant 0 : index
    %c0_145 = arith.constant 0 : index
    %287 = vector.load %arg3[%c0_143, %286, %c0_144, %c0_145] : memref<1x16x16x128xf32, #tpu.memory_space<vmem>>, vector<1x1x16x128xf32>
    %288 = vector.shape_cast %287 : vector<1x1x16x128xf32> to vector<1x16x128xf32>
    %289 = arith.addf %285, %288 : vector<1x16x128xf32>
    %cst_146 = arith.constant 1.000000e+00 : f32
    %290 = vector.broadcast %cst_146 : f32 to vector<1x16x128xf32>
    %291 = arith.cmpf ogt, %289, %290 : vector<1x16x128xf32>
    %292 = arith.extui %291 : vector<1x16x128xi1> to vector<1x16x128xi32>
    %293 = arith.sitofp %292 : vector<1x16x128xi32> to vector<1x16x128xf32>
    %cst_147 = arith.constant -1.000000e+00 : f32
    %294 = vector.broadcast %cst_147 : f32 to vector<1x16x128xf32>
    %295 = arith.cmpf olt, %289, %294 : vector<1x16x128xf32>
    %296 = arith.extui %295 : vector<1x16x128xi1> to vector<1x16x128xi32>
    %297 = arith.sitofp %296 : vector<1x16x128xi32> to vector<1x16x128xf32>
    %c0_148 = arith.constant 0 : index
    %298 = arith.index_cast %c10_i32 : i32 to index
    %c0_149 = arith.constant 0 : index
    %c0_150 = arith.constant 0 : index
    %299 = vector.load %arg4[%c0_148, %298, %c0_149, %c0_150] : memref<1x16x16x256xf32, #tpu.memory_space<vmem>>, vector<1x1x16x128xf32>
    %300 = vector.shape_cast %299 : vector<1x1x16x128xf32> to vector<1x16x128xf32>
    %301 = vector.shape_cast %293 : vector<1x16x128xf32> to vector<1x1x16x128xf32>
    tpu.vector_store %arg4[%c0_148, %298, %c0_149, %c0_150], %301 {strides = array<i32>} : memref<1x16x16x256xf32, #tpu.memory_space<vmem>>, vector<1x1x16x128xf32>,
    %c0_151 = arith.constant 0 : index
    %302 = arith.index_cast %c10_i32 : i32 to index
    %c0_152 = arith.constant 0 : index
    %c128_153 = arith.constant 128 : index
    %303 = vector.load %arg4[%c0_151, %302, %c0_152, %c128_153] : memref<1x16x16x256xf32, #tpu.memory_space<vmem>>, vector<1x1x16x128xf32>
    %304 = vector.shape_cast %303 : vector<1x1x16x128xf32> to vector<1x16x128xf32>
    %305 = vector.shape_cast %297 : vector<1x16x128xf32> to vector<1x1x16x128xf32>
    tpu.vector_store %arg4[%c0_151, %302, %c0_152, %c128_153], %305 {strides = array<i32>} : memref<1x16x16x256xf32, #tpu.memory_space<vmem>>, vector<1x1x16x128xf32>,
    %cst_154 = arith.constant 1.000000e+00 : f32
    %306 = vector.broadcast %cst_154 : f32 to vector<1x16x128xf32>
    %307 = arith.mulf %293, %306 : vector<1x16x128xf32>
    %308 = arith.subf %289, %307 : vector<1x16x128xf32>
    %cst_155 = arith.constant -1.000000e+00 : f32
    %309 = vector.broadcast %cst_155 : f32 to vector<1x16x128xf32>
    %310 = arith.mulf %297, %309 : vector<1x16x128xf32>
    %311 = arith.addf %308, %310 : vector<1x16x128xf32>
    %c11_i32 = arith.constant 11 : i32
    %cst_156 = arith.constant 0.951229453 : f32
    %312 = vector.broadcast %cst_156 : f32 to vector<1x16x128xf32>
    %313 = arith.mulf %312, %311 : vector<1x16x128xf32>
    %c0_157 = arith.constant 0 : index
    %314 = arith.index_cast %c11_i32 : i32 to index
    %c0_158 = arith.constant 0 : index
    %c0_159 = arith.constant 0 : index
    %315 = vector.load %arg3[%c0_157, %314, %c0_158, %c0_159] : memref<1x16x16x128xf32, #tpu.memory_space<vmem>>, vector<1x1x16x128xf32>
    %316 = vector.shape_cast %315 : vector<1x1x16x128xf32> to vector<1x16x128xf32>
    %317 = arith.addf %313, %316 : vector<1x16x128xf32>
    %cst_160 = arith.constant 1.000000e+00 : f32
    %318 = vector.broadcast %cst_160 : f32 to vector<1x16x128xf32>
    %319 = arith.cmpf ogt, %317, %318 : vector<1x16x128xf32>
    %320 = arith.extui %319 : vector<1x16x128xi1> to vector<1x16x128xi32>
    %321 = arith.sitofp %320 : vector<1x16x128xi32> to vector<1x16x128xf32>
    %cst_161 = arith.constant -1.000000e+00 : f32
    %322 = vector.broadcast %cst_161 : f32 to vector<1x16x128xf32>
    %323 = arith.cmpf olt, %317, %322 : vector<1x16x128xf32>
    %324 = arith.extui %323 : vector<1x16x128xi1> to vector<1x16x128xi32>
    %325 = arith.sitofp %324 : vector<1x16x128xi32> to vector<1x16x128xf32>
    %c0_162 = arith.constant 0 : index
    %326 = arith.index_cast %c11_i32 : i32 to index
    %c0_163 = arith.constant 0 : index
    %c0_164 = arith.constant 0 : index
    %327 = vector.load %arg4[%c0_162, %326, %c0_163, %c0_164] : memref<1x16x16x256xf32, #tpu.memory_space<vmem>>, vector<1x1x16x128xf32>
    %328 = vector.shape_cast %327 : vector<1x1x16x128xf32> to vector<1x16x128xf32>
    %329 = vector.shape_cast %321 : vector<1x16x128xf32> to vector<1x1x16x128xf32>
    tpu.vector_store %arg4[%c0_162, %326, %c0_163, %c0_164], %329 {strides = array<i32>} : memref<1x16x16x256xf32, #tpu.memory_space<vmem>>, vector<1x1x16x128xf32>,
    %c0_165 = arith.constant 0 : index
    %330 = arith.index_cast %c11_i32 : i32 to index
    %c0_166 = arith.constant 0 : index
    %c128_167 = arith.constant 128 : index
    %331 = vector.load %arg4[%c0_165, %330, %c0_166, %c128_167] : memref<1x16x16x256xf32, #tpu.memory_space<vmem>>, vector<1x1x16x128xf32>
    %332 = vector.shape_cast %331 : vector<1x1x16x128xf32> to vector<1x16x128xf32>
    %333 = vector.shape_cast %325 : vector<1x16x128xf32> to vector<1x1x16x128xf32>
    tpu.vector_store %arg4[%c0_165, %330, %c0_166, %c128_167], %333 {strides = array<i32>} : memref<1x16x16x256xf32, #tpu.memory_space<vmem>>, vector<1x1x16x128xf32>,
    %cst_168 = arith.constant 1.000000e+00 : f32
    %334 = vector.broadcast %cst_168 : f32 to vector<1x16x128xf32>
    %335 = arith.mulf %321, %334 : vector<1x16x128xf32>
    %336 = arith.subf %317, %335 : vector<1x16x128xf32>
    %cst_169 = arith.constant -1.000000e+00 : f32
    %337 = vector.broadcast %cst_169 : f32 to vector<1x16x128xf32>
    %338 = arith.mulf %325, %337 : vector<1x16x128xf32>
    %339 = arith.addf %336, %338 : vector<1x16x128xf32>
    %c12_i32 = arith.constant 12 : i32
    %cst_170 = arith.constant 0.951229453 : f32
    %340 = vector.broadcast %cst_170 : f32 to vector<1x16x128xf32>
    %341 = arith.mulf %340, %339 : vector<1x16x128xf32>
    %c0_171 = arith.constant 0 : index
    %342 = arith.index_cast %c12_i32 : i32 to index
    %c0_172 = arith.constant 0 : index
    %c0_173 = arith.constant 0 : index
    %343 = vector.load %arg3[%c0_171, %342, %c0_172, %c0_173] : memref<1x16x16x128xf32, #tpu.memory_space<vmem>>, vector<1x1x16x128xf32>
    %344 = vector.shape_cast %343 : vector<1x1x16x128xf32> to vector<1x16x128xf32>
    %345 = arith.addf %341, %344 : vector<1x16x128xf32>
    %cst_174 = arith.constant 1.000000e+00 : f32
    %346 = vector.broadcast %cst_174 : f32 to vector<1x16x128xf32>
    %347 = arith.cmpf ogt, %345, %346 : vector<1x16x128xf32>
    %348 = arith.extui %347 : vector<1x16x128xi1> to vector<1x16x128xi32>
    %349 = arith.sitofp %348 : vector<1x16x128xi32> to vector<1x16x128xf32>
    %cst_175 = arith.constant -1.000000e+00 : f32
    %350 = vector.broadcast %cst_175 : f32 to vector<1x16x128xf32>
    %351 = arith.cmpf olt, %345, %350 : vector<1x16x128xf32>
    %352 = arith.extui %351 : vector<1x16x128xi1> to vector<1x16x128xi32>
    %353 = arith.sitofp %352 : vector<1x16x128xi32> to vector<1x16x128xf32>
    %c0_176 = arith.constant 0 : index
    %354 = arith.index_cast %c12_i32 : i32 to index
    %c0_177 = arith.constant 0 : index
    %c0_178 = arith.constant 0 : index
    %355 = vector.load %arg4[%c0_176, %354, %c0_177, %c0_178] : memref<1x16x16x256xf32, #tpu.memory_space<vmem>>, vector<1x1x16x128xf32>
    %356 = vector.shape_cast %355 : vector<1x1x16x128xf32> to vector<1x16x128xf32>
    %357 = vector.shape_cast %349 : vector<1x16x128xf32> to vector<1x1x16x128xf32>
    tpu.vector_store %arg4[%c0_176, %354, %c0_177, %c0_178], %357 {strides = array<i32>} : memref<1x16x16x256xf32, #tpu.memory_space<vmem>>, vector<1x1x16x128xf32>,
    %c0_179 = arith.constant 0 : index
    %358 = arith.index_cast %c12_i32 : i32 to index
    %c0_180 = arith.constant 0 : index
    %c128_181 = arith.constant 128 : index
    %359 = vector.load %arg4[%c0_179, %358, %c0_180, %c128_181] : memref<1x16x16x256xf32, #tpu.memory_space<vmem>>, vector<1x1x16x128xf32>
    %360 = vector.shape_cast %359 : vector<1x1x16x128xf32> to vector<1x16x128xf32>
    %361 = vector.shape_cast %353 : vector<1x16x128xf32> to vector<1x1x16x128xf32>
    tpu.vector_store %arg4[%c0_179, %358, %c0_180, %c128_181], %361 {strides = array<i32>} : memref<1x16x16x256xf32, #tpu.memory_space<vmem>>, vector<1x1x16x128xf32>,
    %cst_182 = arith.constant 1.000000e+00 : f32
    %362 = vector.broadcast %cst_182 : f32 to vector<1x16x128xf32>
    %363 = arith.mulf %349, %362 : vector<1x16x128xf32>
    %364 = arith.subf %345, %363 : vector<1x16x128xf32>
    %cst_183 = arith.constant -1.000000e+00 : f32
    %365 = vector.broadcast %cst_183 : f32 to vector<1x16x128xf32>
    %366 = arith.mulf %353, %365 : vector<1x16x128xf32>
    %367 = arith.addf %364, %366 : vector<1x16x128xf32>
    %c13_i32 = arith.constant 13 : i32
    %cst_184 = arith.constant 0.951229453 : f32
    %368 = vector.broadcast %cst_184 : f32 to vector<1x16x128xf32>
    %369 = arith.mulf %368, %367 : vector<1x16x128xf32>
    %c0_185 = arith.constant 0 : index
    %370 = arith.index_cast %c13_i32 : i32 to index
    %c0_186 = arith.constant 0 : index
    %c0_187 = arith.constant 0 : index
    %371 = vector.load %arg3[%c0_185, %370, %c0_186, %c0_187] : memref<1x16x16x128xf32, #tpu.memory_space<vmem>>, vector<1x1x16x128xf32>
    %372 = vector.shape_cast %371 : vector<1x1x16x128xf32> to vector<1x16x128xf32>
    %373 = arith.addf %369, %372 : vector<1x16x128xf32>
    %cst_188 = arith.constant 1.000000e+00 : f32
    %374 = vector.broadcast %cst_188 : f32 to vector<1x16x128xf32>
    %375 = arith.cmpf ogt, %373, %374 : vector<1x16x128xf32>
    %376 = arith.extui %375 : vector<1x16x128xi1> to vector<1x16x128xi32>
    %377 = arith.sitofp %376 : vector<1x16x128xi32> to vector<1x16x128xf32>
    %cst_189 = arith.constant -1.000000e+00 : f32
    %378 = vector.broadcast %cst_189 : f32 to vector<1x16x128xf32>
    %379 = arith.cmpf olt, %373, %378 : vector<1x16x128xf32>
    %380 = arith.extui %379 : vector<1x16x128xi1> to vector<1x16x128xi32>
    %381 = arith.sitofp %380 : vector<1x16x128xi32> to vector<1x16x128xf32>
    %c0_190 = arith.constant 0 : index
    %382 = arith.index_cast %c13_i32 : i32 to index
    %c0_191 = arith.constant 0 : index
    %c0_192 = arith.constant 0 : index
    %383 = vector.load %arg4[%c0_190, %382, %c0_191, %c0_192] : memref<1x16x16x256xf32, #tpu.memory_space<vmem>>, vector<1x1x16x128xf32>
    %384 = vector.shape_cast %383 : vector<1x1x16x128xf32> to vector<1x16x128xf32>
    %385 = vector.shape_cast %377 : vector<1x16x128xf32> to vector<1x1x16x128xf32>
    tpu.vector_store %arg4[%c0_190, %382, %c0_191, %c0_192], %385 {strides = array<i32>} : memref<1x16x16x256xf32, #tpu.memory_space<vmem>>, vector<1x1x16x128xf32>,
    %c0_193 = arith.constant 0 : index
    %386 = arith.index_cast %c13_i32 : i32 to index
    %c0_194 = arith.constant 0 : index
    %c128_195 = arith.constant 128 : index
    %387 = vector.load %arg4[%c0_193, %386, %c0_194, %c128_195] : memref<1x16x16x256xf32, #tpu.memory_space<vmem>>, vector<1x1x16x128xf32>
    %388 = vector.shape_cast %387 : vector<1x1x16x128xf32> to vector<1x16x128xf32>
    %389 = vector.shape_cast %381 : vector<1x16x128xf32> to vector<1x1x16x128xf32>
    tpu.vector_store %arg4[%c0_193, %386, %c0_194, %c128_195], %389 {strides = array<i32>} : memref<1x16x16x256xf32, #tpu.memory_space<vmem>>, vector<1x1x16x128xf32>,
    %cst_196 = arith.constant 1.000000e+00 : f32
    %390 = vector.broadcast %cst_196 : f32 to vector<1x16x128xf32>
    %391 = arith.mulf %377, %390 : vector<1x16x128xf32>
    %392 = arith.subf %373, %391 : vector<1x16x128xf32>
    %cst_197 = arith.constant -1.000000e+00 : f32
    %393 = vector.broadcast %cst_197 : f32 to vector<1x16x128xf32>
    %394 = arith.mulf %381, %393 : vector<1x16x128xf32>
    %395 = arith.addf %392, %394 : vector<1x16x128xf32>
    %c14_i32 = arith.constant 14 : i32
    %cst_198 = arith.constant 0.951229453 : f32
    %396 = vector.broadcast %cst_198 : f32 to vector<1x16x128xf32>
    %397 = arith.mulf %396, %395 : vector<1x16x128xf32>
    %c0_199 = arith.constant 0 : index
    %398 = arith.index_cast %c14_i32 : i32 to index
    %c0_200 = arith.constant 0 : index
    %c0_201 = arith.constant 0 : index
    %399 = vector.load %arg3[%c0_199, %398, %c0_200, %c0_201] : memref<1x16x16x128xf32, #tpu.memory_space<vmem>>, vector<1x1x16x128xf32>
    %400 = vector.shape_cast %399 : vector<1x1x16x128xf32> to vector<1x16x128xf32>
    %401 = arith.addf %397, %400 : vector<1x16x128xf32>
    %cst_202 = arith.constant 1.000000e+00 : f32
    %402 = vector.broadcast %cst_202 : f32 to vector<1x16x128xf32>
    %403 = arith.cmpf ogt, %401, %402 : vector<1x16x128xf32>
    %404 = arith.extui %403 : vector<1x16x128xi1> to vector<1x16x128xi32>
    %405 = arith.sitofp %404 : vector<1x16x128xi32> to vector<1x16x128xf32>
    %cst_203 = arith.constant -1.000000e+00 : f32
    %406 = vector.broadcast %cst_203 : f32 to vector<1x16x128xf32>
    %407 = arith.cmpf olt, %401, %406 : vector<1x16x128xf32>
    %408 = arith.extui %407 : vector<1x16x128xi1> to vector<1x16x128xi32>
    %409 = arith.sitofp %408 : vector<1x16x128xi32> to vector<1x16x128xf32>
    %c0_204 = arith.constant 0 : index
    %410 = arith.index_cast %c14_i32 : i32 to index
    %c0_205 = arith.constant 0 : index
    %c0_206 = arith.constant 0 : index
    %411 = vector.load %arg4[%c0_204, %410, %c0_205, %c0_206] : memref<1x16x16x256xf32, #tpu.memory_space<vmem>>, vector<1x1x16x128xf32>
    %412 = vector.shape_cast %411 : vector<1x1x16x128xf32> to vector<1x16x128xf32>
    %413 = vector.shape_cast %405 : vector<1x16x128xf32> to vector<1x1x16x128xf32>
    tpu.vector_store %arg4[%c0_204, %410, %c0_205, %c0_206], %413 {strides = array<i32>} : memref<1x16x16x256xf32, #tpu.memory_space<vmem>>, vector<1x1x16x128xf32>,
    %c0_207 = arith.constant 0 : index
    %414 = arith.index_cast %c14_i32 : i32 to index
    %c0_208 = arith.constant 0 : index
    %c128_209 = arith.constant 128 : index
    %415 = vector.load %arg4[%c0_207, %414, %c0_208, %c128_209] : memref<1x16x16x256xf32, #tpu.memory_space<vmem>>, vector<1x1x16x128xf32>
    %416 = vector.shape_cast %415 : vector<1x1x16x128xf32> to vector<1x16x128xf32>
    %417 = vector.shape_cast %409 : vector<1x16x128xf32> to vector<1x1x16x128xf32>
    tpu.vector_store %arg4[%c0_207, %414, %c0_208, %c128_209], %417 {strides = array<i32>} : memref<1x16x16x256xf32, #tpu.memory_space<vmem>>, vector<1x1x16x128xf32>,
    %cst_210 = arith.constant 1.000000e+00 : f32
    %418 = vector.broadcast %cst_210 : f32 to vector<1x16x128xf32>
    %419 = arith.mulf %405, %418 : vector<1x16x128xf32>
    %420 = arith.subf %401, %419 : vector<1x16x128xf32>
    %cst_211 = arith.constant -1.000000e+00 : f32
    %421 = vector.broadcast %cst_211 : f32 to vector<1x16x128xf32>
    %422 = arith.mulf %409, %421 : vector<1x16x128xf32>
    %423 = arith.addf %420, %422 : vector<1x16x128xf32>
    %c15_i32 = arith.constant 15 : i32
    %cst_212 = arith.constant 0.951229453 : f32
    %424 = vector.broadcast %cst_212 : f32 to vector<1x16x128xf32>
    %425 = arith.mulf %424, %423 : vector<1x16x128xf32>
    %c0_213 = arith.constant 0 : index
    %426 = arith.index_cast %c15_i32 : i32 to index
    %c0_214 = arith.constant 0 : index
    %c0_215 = arith.constant 0 : index
    %427 = vector.load %arg3[%c0_213, %426, %c0_214, %c0_215] : memref<1x16x16x128xf32, #tpu.memory_space<vmem>>, vector<1x1x16x128xf32>
    %428 = vector.shape_cast %427 : vector<1x1x16x128xf32> to vector<1x16x128xf32>
    %429 = arith.addf %425, %428 : vector<1x16x128xf32>
    %cst_216 = arith.constant 1.000000e+00 : f32
    %430 = vector.broadcast %cst_216 : f32 to vector<1x16x128xf32>
    %431 = arith.cmpf ogt, %429, %430 : vector<1x16x128xf32>
    %432 = arith.extui %431 : vector<1x16x128xi1> to vector<1x16x128xi32>
    %433 = arith.sitofp %432 : vector<1x16x128xi32> to vector<1x16x128xf32>
    %cst_217 = arith.constant -1.000000e+00 : f32
    %434 = vector.broadcast %cst_217 : f32 to vector<1x16x128xf32>
    %435 = arith.cmpf olt, %429, %434 : vector<1x16x128xf32>
    %436 = arith.extui %435 : vector<1x16x128xi1> to vector<1x16x128xi32>
    %437 = arith.sitofp %436 : vector<1x16x128xi32> to vector<1x16x128xf32>
    %c0_218 = arith.constant 0 : index
    %438 = arith.index_cast %c15_i32 : i32 to index
    %c0_219 = arith.constant 0 : index
    %c0_220 = arith.constant 0 : index
    %439 = vector.load %arg4[%c0_218, %438, %c0_219, %c0_220] : memref<1x16x16x256xf32, #tpu.memory_space<vmem>>, vector<1x1x16x128xf32>
    %440 = vector.shape_cast %439 : vector<1x1x16x128xf32> to vector<1x16x128xf32>
    %441 = vector.shape_cast %433 : vector<1x16x128xf32> to vector<1x1x16x128xf32>
    tpu.vector_store %arg4[%c0_218, %438, %c0_219, %c0_220], %441 {strides = array<i32>} : memref<1x16x16x256xf32, #tpu.memory_space<vmem>>, vector<1x1x16x128xf32>,
    %c0_221 = arith.constant 0 : index
    %442 = arith.index_cast %c15_i32 : i32 to index
    %c0_222 = arith.constant 0 : index
    %c128_223 = arith.constant 128 : index
    %443 = vector.load %arg4[%c0_221, %442, %c0_222, %c128_223] : memref<1x16x16x256xf32, #tpu.memory_space<vmem>>, vector<1x1x16x128xf32>
    %444 = vector.shape_cast %443 : vector<1x1x16x128xf32> to vector<1x16x128xf32>
    %445 = vector.shape_cast %437 : vector<1x16x128xf32> to vector<1x1x16x128xf32>
    tpu.vector_store %arg4[%c0_221, %442, %c0_222, %c128_223], %445 {strides = array<i32>} : memref<1x16x16x256xf32, #tpu.memory_space<vmem>>, vector<1x1x16x128xf32>,
    %cst_224 = arith.constant 1.000000e+00 : f32
    %446 = vector.broadcast %cst_224 : f32 to vector<1x16x128xf32>
    %447 = arith.mulf %433, %446 : vector<1x16x128xf32>
    %448 = arith.subf %429, %447 : vector<1x16x128xf32>
    %cst_225 = arith.constant -1.000000e+00 : f32
    %449 = vector.broadcast %cst_225 : f32 to vector<1x16x128xf32>
    %450 = arith.mulf %437, %449 : vector<1x16x128xf32>
    %451 = arith.addf %448, %450 : vector<1x16x128xf32>
    %c16_i32 = arith.constant 16 : i32
    %c0_226 = arith.constant 0 : index
    %c0_227 = arith.constant 0 : index
    %c0_228 = arith.constant 0 : index
    %452 = vector.load %arg5[%c0_226, %c0_227, %c0_228] : memref<1x16x128xf32, #tpu.memory_space<vmem>>, vector<1x16x128xf32>
    tpu.vector_store %arg5[%c0_226, %c0_227, %c0_228], %451 {strides = array<i32>} : memref<1x16x128xf32, #tpu.memory_space<vmem>>, vector<1x16x128xf32>,
    return
  }
  func.func @transform_0(%arg0: i32, %arg1: i32, %arg2: i32) -> (i32, i32, i32, i32) {
    %c0_i32 = arith.constant 0 : i32
    %c0_i32_0 = arith.constant 0 : i32
    return %arg0, %arg2, %arg1, %c0_i32 : i32, i32, i32, i32
  }
  func.func @transform_1(%arg0: i32, %arg1: i32, %arg2: i32) -> (i32, i32, i32, i32) {
    %c0_i32 = arith.constant 0 : i32
    %c0_i32_0 = arith.constant 0 : i32
    return %arg0, %arg2, %arg1, %c0_i32 : i32, i32, i32, i32
  }
}

</mosaic_0001>

<llo_original>
// kernel: tpu_custom_call.1
$region0: #{tpu_custom_call.1}
  #allocation0 [shape = 'u32[]', space=smem, size = 0x4, offset = 0x4, fixed_abs, tag = 'smem constant byte address 0x4 - core index']
  #allocation1 [shape = 'u32[144,128]{1,0:T(1,128)}', space=vmem, size = 0x12000, scoped, tag = 'internal scratch']
  #allocation2 [shape = 'f32[1,16,128]{2,1,0:T(8,128)}', space=vmem, size = 0x2000, scoped, tag = 'scratch operand']
  %s0 = inlined_call_operand.hbm [shape: f32[2,32,16,128], index: 0, kind: input, shape index: {}]
  %s1 = inlined_call_operand.hbm [shape: f32[2,32,16,256], index: 1, kind: output, shape index: {}]
  %s2 = sld [smem:[#allocation0]]
  $region45: #{tpu_custom_call.1} parent=0
    _
  %s4 = ssub.s32 1, %s2
  %s5 = scalar_select 0, %s4, %s2
  $region1: #{tpu_custom_call.1} parent=0
    #allocation3 [shape = 'u8[262144]{0}', space=vmem, size = 0x40000, scoped, tag = 'input window, operand 0']
    #allocation4 [shape = 's32[2]{0}', space=sflag, size = 0x8, scoped, tag = 'scoped memory for tpu_custom_call.1']
    #allocation5 [shape = 's32[2]{0}', space=sflag, size = 0x8, scoped, tag = 'scoped memory for tpu_custom_call.1']
    #allocation6 [shape = 'u8[524288]{0}', space=vmem, size = 0x80000, scoped, tag = 'output window, operand 0']
    %6 = vsyncpa [#allocation4], 0
    %s7 = scalar_lea.sflag [#allocation4], 1
    %8 = vsyncpa %s7, 0
    %9 = vsyncpa [#allocation5], 0
    %s10 = scalar_lea.sflag [#allocation5], 1
    %11 = vsyncpa %s10, 0
    loop: start=0, step=1, limit=6
    $region2: #{tpu_custom_call.1} parent=1 // loop_pre_header
      _
    $region3: #{tpu_custom_call.1} parent=1 // loop_header
      %s13 = sphi 0, %s17
      %p14 = scmp.ge.s32.totalorder %s13, 6
      %s20 = sphi 0, %s39
      %s21 = sphi 0, %s35
      %s22 = sphi 0, %s31
      %s23 = sphi 0, %s20
      %s24 = sphi 0, %s21
      %s25 = sphi 0, %s22
      %s26 = sphi 0, %s23
      %s27 = sphi 0, %s24
      %s28 = sphi 0, %s25
      %s46 = sphi 0, %s48
      %s49 = sphi 0, %s46
      %s50 = sphi 0, %s49
      %s66 = sphi 0, %s50
      %s76 = sphi 0, %s78
      %s79 = sphi 0, %s76
      %s80 = sphi 0, %s79
      %s96 = sphi 0, %s80
    $region4: #{tpu_custom_call.1} parent=1 // loop_header_branch
      %16 = sbr.rel (%p14) target = $region8
    $region5: #{tpu_custom_call.1} parent=1 // loop_body
      %s18 = ssub.s32 %s13, 1
      %s19 = ssub.s32 %s13, 2
      %s29 = sadd.s32 1, %s22
      %p30 = scmp.ge.s32.totalorder %s29, 2
      %s31 = scalar_select %p30, 0, %s29
      %s32 = sadd.s32 1, %s21
      %s33 = scalar_select %p30, %s32, %s21
      %p34 = scmp.ge.s32.totalorder %s33, 1
      %s35 = scalar_select %p34, 0, %s33
      %s36 = sadd.s32 1, %s20
      %s37 = scalar_select %p34, %s36, %s20
      %p38 = scmp.ge.s32.totalorder %s37, 2
      %s39 = scalar_select %p38, 0, %s37
      %s40 = ssub.s32 %s20, %s39
      %s41 = ssub.s32 %s22, %s31
      %s42 = sor.u32 %s40, %s41
      %s43 = ssub.s32 %s21, %s35
      %s44 = sor.u32 %s42, %s43
      %p45 = scmp.eq.s32.totalorder %s44, 0
      %s47 = sadd.s32 %s46, 1
      %s48 = scalar_select %p45, %s46, %s47
      %p51 = pneg %p45
      %p52 = scmp.eq.s32.totalorder %s13, 3
      %p53 = por %p51, %p52
      %p54 = scmp.ne.s32.totalorder %s46, %s49
      %p55 = scmp.eq.s32.totalorder %s13, 0
      %p56 = por %p54, %p55
      %p57 = scmp.ne.s32.totalorder %s46, %s49
      %p58 = scmp.eq.s32.totalorder %s18, 3
      %p59 = por %p57, %p58
      %p60 = scmp.ne.s32.totalorder %s49, %s50
      %p61 = scmp.eq.s32.totalorder %s18, 0
      %p62 = por %p60, %p61
      %p63 = scmp.ne.s32.totalorder %s49, %s50
      %p64 = scmp.eq.s32.totalorder %s19, 3
      %p65 = por %p63, %p64
      %p67 = scmp.ne.s32.totalorder %s50, %s66
      %p68 = scmp.eq.s32.totalorder %s19, 0
      %p69 = por %p67, %p68
      %s70 = ssub.s32 %s20, %s39
      %s71 = ssub.s32 %s22, %s31
      %s72 = sor.u32 %s70, %s71
      %s73 = ssub.s32 %s21, %s35
      %s74 = sor.u32 %s72, %s73
      %p75 = scmp.eq.s32.totalorder %s74, 0
      %s77 = sadd.s32 %s76, 1
      %s78 = scalar_select %p75, %s76, %s77
      %p81 = pneg %p75
      %p82 = scmp.eq.s32.totalorder %s13, 3
      %p83 = por %p81, %p82
      %p84 = scmp.ne.s32.totalorder %s76, %s79
      %p85 = scmp.eq.s32.totalorder %s13, 0
      %p86 = por %p84, %p85
      %p87 = scmp.ne.s32.totalorder %s76, %s79
      %p88 = scmp.eq.s32.totalorder %s18, 3
      %p89 = por %p87, %p88
      %p90 = scmp.ne.s32.totalorder %s79, %s80
      %p91 = scmp.eq.s32.totalorder %s18, 0
      %p92 = por %p90, %p91
      %p93 = scmp.ne.s32.totalorder %s79, %s80
      %p94 = scmp.eq.s32.totalorder %s19, 3
      %p95 = por %p93, %p94
      %p97 = scmp.ne.s32.totalorder %s80, %s96
      %p98 = scmp.eq.s32.totalorder %s19, 0
      %p99 = por %p97, %p98
      %p100 = scmp.le.s32.totalorder 1, %s13
      %p101 = scmp.lt.s32.totalorder %s13, 5
      %p102 = pnand %p100, %p101
      %p103 = pneg %p102
      // Predicated region
      $region9: #{tpu_custom_call.1} parent=5 // pred_check
        _
      $region10: #{tpu_custom_call.1} parent=5 // pred_check_branch
        %105 = sbr.rel (%p102) target = $region12
      $region11: #{tpu_custom_call.1} parent=5 // pred_region
        %s106 = ssub.s32 %s13, 1
      $region12: #{tpu_custom_call.1} parent=5 // pred_fallthru
        _
      %p107 = scmp.lt.s32.totalorder %s13, 4
      // Predicated region
      $region13: #{tpu_custom_call.1} parent=5 // pred_check
        %p108 = pneg %p107
      $region14: #{tpu_custom_call.1} parent=5 // pred_check_branch
        %110 = sbr.rel (%p108) target = $region16
      $region15: #{tpu_custom_call.1} parent=5 // pred_region
        // Predicated region
        $region17: #{tpu_custom_call.1} parent=15 // pred_check
          %p111 = pneg %p56
        $region18: #{tpu_custom_call.1} parent=15 // pred_check_branch
          %113 = sbr.rel (%p111) target = $region20
        $region19: #{tpu_custom_call.1} parent=15 // pred_region
          %s114 = sand.u32 %s46, 1
          %s115 = scalar_lea.sflag [#allocation4], %s114
          %s116 = sand.u32 %s46, 1
          %s117 = smul.addr %s116, 256
          %s118 = scalar_lea.vmem [#allocation3], %s117
          %s119 = smul.u32 16, %s22
          %s120 = smul.u32 2, %s21
          %s122 = ssub.s32 4096, 4096
          %123 = vsyncadd %s115, %s122
          %s124 = smul.addr %s119, 2
          %s125 = sadd.s32 %s120, %s124
          %s126 = smul.addr %s20, 64
          %s127 = sadd.s32 %s125, %s126
          %s128 = smul.addr %s127, 128
          %s129 = scalar_lea.hbm %s0, %s128
          %s130 = sshll.u32 %s118, 4
          %s131 = int_to_ptr.vmem [resolvable:$true] %s130
          %136 = dma.hbm_to_vmem [thread:$0]  %s129, 4096, %s131, %s115, 128, 128, 8
        $region20: #{tpu_custom_call.1} parent=15 // pred_fallthru
          _
      $region16: #{tpu_custom_call.1} parent=5 // pred_fallthru
        _
      %p137 = scmp.le.s32.totalorder 1, %s13
      %p138 = scmp.lt.s32.totalorder %s13, 5
      %p139 = pnand %p137, %p138
      %p140 = pneg %p139
      // Predicated region
      $region21: #{tpu_custom_call.1} parent=5 // pred_check
        _
      $region22: #{tpu_custom_call.1} parent=5 // pred_check_branch
        %142 = sbr.rel (%p139) target = $region24
      $region23: #{tpu_custom_call.1} parent=5 // pred_region
        %s143 = ssub.s32 %s13, 1
        %s144 = sand.u32 %s49, 1
        %s145 = scalar_lea.sflag [#allocation4], %s144
        %s146 = sand.u32 %s49, 1
        %s147 = smul.addr %s146, 256
        %s148 = scalar_lea.vmem [#allocation3], %s147
        // Predicated region
        $region25: #{tpu_custom_call.1} parent=23 // pred_check
          %p149 = pneg %p62
        $region26: #{tpu_custom_call.1} parent=23 // pred_check_branch
          %151 = sbr.rel (%p149) target = $region28
        $region27: #{tpu_custom_call.1} parent=23 // pred_region
          %152 = dma.done %s145, 4096
        $region28: #{tpu_custom_call.1} parent=23 // pred_fallthru
          _
        %s153 = sand.u32 %s49, 1
        %s154 = scalar_lea.sflag [#allocation4], %s153
        %s155 = sand.u32 %s49, 1
        %s156 = smul.addr %s155, 256
        %s157 = scalar_lea.vmem [#allocation3], %s156
        %p158 = pneg %p62
        %p159 = pneg %p59
        %p160 = pneg %p92
        %p161 = pneg %p89
        %s162 = sand.u32 %s79, 1
        %s163 = scalar_lea.sflag [#allocation5], %s162
        %s164 = sand.u32 %s79, 1
        %s165 = smul.addr %s164, 512
        %s166 = scalar_lea.vmem [#allocation6], %s165
        %s167 = smul.u32 16, %s25
        %s168 = smul.u32 2, %s24
        %s169 = smul.u32 16, %s25
        %s170 = smul.u32 2, %s24
        %p171 = scmp.eq.s32.totalorder %s25, 0
        // Predicated region
        $region29: #{tpu_custom_call.1} parent=23 // pred_check
          %p172 = pneg %p171
        $region30: #{tpu_custom_call.1} parent=23 // pred_check_branch
          %174 = sbr.rel (%p172) target = $region32
        $region31: #{tpu_custom_call.1} parent=23 // pred_region
          %175 = vst [vmem:[#allocation2] sm:$0xff] 0.0
          %176 = vst [vmem:[#allocation2 + $0x8] sm:$0xff] 0.0
        $region32: #{tpu_custom_call.1} parent=23 // pred_fallthru
          _
        %v177 = vld [vmem:[#allocation2] sm:$0xff]
        %v178 = vld [vmem:[#allocation2 + $0x8] sm:$0xff]
        %v179 = vmul.f32 %v177, 0.95122945
        %v180 = vmul.f32 %v178, 0.95122945
        %v181 = vld [vmem:[%s148] sm:$0xff]
        %v182 = vld [vmem:[%s148 + $0x8] sm:$0xff]
        %v183 = vadd.f32 %v179, %v181
        %v184 = vadd.f32 %v180, %v182
        %vm185 = vcmp.gt.f32.partialorder %v183, 1.0
        %vm186 = vcmp.gt.f32.partialorder %v184, 1.0
        %v187 = vsel %vm185, 1, 0
        %v188 = vsel %vm186, 1, 0
        %v189 = vcvt.s32.f32 %v187
        %v190 = vcvt.s32.f32 %v188
        %vm191 = vcmp.lt.f32.partialorder %v183, -1.0
        %vm192 = vcmp.lt.f32.partialorder %v184, -1.0
        %v193 = vsel %vm191, 1, 0
        %v194 = vsel %vm192, 1, 0
        %v195 = vcvt.s32.f32 %v193
        %v196 = vcvt.s32.f32 %v194
        %197 = vst [vmem:[%s166] sm:$0xff] %v189
        %198 = vst [vmem:[%s166 + $0x10] sm:$0xff] %v190
        %199 = vst [vmem:[%s166 + $0x8] sm:$0xff] %v195
        %200 = vst [vmem:[%s166 + $0x18] sm:$0xff] %v196
        %v201 = vsub.f32 %v183, %v189
        %v202 = vsub.f32 %v184, %v190
        %v203 = vmul.f32 %v195, -1.0
        %v204 = vmul.f32 %v196, -1.0
        %v205 = vadd.f32 %v201, %v203
        %v206 = vadd.f32 %v202, %v204
        %v207 = vmul.f32 %v205, 0.95122945
        %v208 = vmul.f32 %v206, 0.95122945
        %s209 = scalar_lea.vmem %s148, 16 [#allocation3]
        %v210 = vld [vmem:[%s209] sm:$0xff]
        %v211 = vld [vmem:[%s209 + $0x8] sm:$0xff]
        %v212 = vadd.f32 %v207, %v210
        %v213 = vadd.f32 %v208, %v211
        %vm214 = vcmp.gt.f32.partialorder %v212, 1.0
        %vm215 = vcmp.gt.f32.partialorder %v213, 1.0
        %v216 = vsel %vm214, 1, 0
        %v217 = vsel %vm215, 1, 0
        %v218 = vcvt.s32.f32 %v216
        %v219 = vcvt.s32.f32 %v217
        %vm220 = vcmp.lt.f32.partialorder %v212, -1.0
        %vm221 = vcmp.lt.f32.partialorder %v213, -1.0
        %v222 = vsel %vm220, 1, 0
        %v223 = vsel %vm221, 1, 0
        %v224 = vcvt.s32.f32 %v222
        %v225 = vcvt.s32.f32 %v223
        %s226 = scalar_lea.vmem %s166, 32 [#allocation6]
        %227 = vst [vmem:[%s226] sm:$0xff] %v218
        %228 = vst [vmem:[%s226 + $0x10] sm:$0xff] %v219
        %229 = vst [vmem:[%s226 + $0x8] sm:$0xff] %v224
        %230 = vst [vmem:[%s226 + $0x18] sm:$0xff] %v225
        %v231 = vsub.f32 %v212, %v218
        %v232 = vsub.f32 %v213, %v219
        %v233 = vmul.f32 %v224, -1.0
        %v234 = vmul.f32 %v225, -1.0
        %v235 = vadd.f32 %v231, %v233
        %v236 = vadd.f32 %v232, %v234
        %v237 = vmul.f32 %v235, 0.95122945
        %v238 = vmul.f32 %v236, 0.95122945
        %s239 = scalar_lea.vmem %s148, 32 [#allocation3]
        %v240 = vld [vmem:[%s239] sm:$0xff]
        %v241 = vld [vmem:[%s239 + $0x8] sm:$0xff]
        %v242 = vadd.f32 %v237, %v240
        %v243 = vadd.f32 %v238, %v241
        %vm244 = vcmp.gt.f32.partialorder %v242, 1.0
        %vm245 = vcmp.gt.f32.partialorder %v243, 1.0
        %v246 = vsel %vm244, 1, 0
        %v247 = vsel %vm245, 1, 0
        %v248 = vcvt.s32.f32 %v246
        %v249 = vcvt.s32.f32 %v247
        %vm250 = vcmp.lt.f32.partialorder %v242, -1.0
        %vm251 = vcmp.lt.f32.partialorder %v243, -1.0
        %v252 = vsel %vm250, 1, 0
        %v253 = vsel %vm251, 1, 0
        %v254 = vcvt.s32.f32 %v252
        %v255 = vcvt.s32.f32 %v253
        %s256 = scalar_lea.vmem %s166, 64 [#allocation6]
        %257 = vst [vmem:[%s256] sm:$0xff] %v248
        %258 = vst [vmem:[%s256 + $0x10] sm:$0xff] %v249
        %259 = vst [vmem:[%s256 + $0x8] sm:$0xff] %v254
        %260 = vst [vmem:[%s256 + $0x18] sm:$0xff] %v255
        %v261 = vsub.f32 %v242, %v248
        %v262 = vsub.f32 %v243, %v249
        %v263 = vmul.f32 %v254, -1.0
        %v264 = vmul.f32 %v255, -1.0
        %v265 = vadd.f32 %v261, %v263
        %v266 = vadd.f32 %v262, %v264
        %v267 = vmul.f32 %v265, 0.95122945
        %v268 = vmul.f32 %v266, 0.95122945
        %s269 = scalar_lea.vmem %s148, 48 [#allocation3]
        %v270 = vld [vmem:[%s269] sm:$0xff]
        %v271 = vld [vmem:[%s269 + $0x8] sm:$0xff]
        %v272 = vadd.f32 %v267, %v270
        %v273 = vadd.f32 %v268, %v271
        %vm274 = vcmp.gt.f32.partialorder %v272, 1.0
        %vm275 = vcmp.gt.f32.partialorder %v273, 1.0
        %v276 = vsel %vm274, 1, 0
        %v277 = vsel %vm275, 1, 0
        %v278 = vcvt.s32.f32 %v276
        %v279 = vcvt.s32.f32 %v277
        %vm280 = vcmp.lt.f32.partialorder %v272, -1.0
        %vm281 = vcmp.lt.f32.partialorder %v273, -1.0
        %v282 = vsel %vm280, 1, 0
        %v283 = vsel %vm281, 1, 0
        %v284 = vcvt.s32.f32 %v282
        %v285 = vcvt.s32.f32 %v283
        %s286 = scalar_lea.vmem %s166, 96 [#allocation6]
        %287 = vst [vmem:[%s286] sm:$0xff] %v278
        %288 = vst [vmem:[%s286 + $0x10] sm:$0xff] %v279
        %289 = vst [vmem:[%s286 + $0x8] sm:$0xff] %v284
        %290 = vst [vmem:[%s286 + $0x18] sm:$0xff] %v285
        %v291 = vsub.f32 %v272, %v278
        %v292 = vsub.f32 %v273, %v279
        %v293 = vmul.f32 %v284, -1.0
        %v294 = vmul.f32 %v285, -1.0
        %v295 = vadd.f32 %v291, %v293
        %v296 = vadd.f32 %v292, %v294
        %v297 = vmul.f32 %v295, 0.95122945
        %v298 = vmul.f32 %v296, 0.95122945
        %s299 = scalar_lea.vmem %s148, 64 [#allocation3]
        %v300 = vld [vmem:[%s299] sm:$0xff]
        %v301 = vld [vmem:[%s299 + $0x8] sm:$0xff]
        %v302 = vadd.f32 %v297, %v300
        %v303 = vadd.f32 %v298, %v301
        %vm304 = vcmp.gt.f32.partialorder %v302, 1.0
        %vm305 = vcmp.gt.f32.partialorder %v303, 1.0
        %v306 = vsel %vm304, 1, 0
        %v307 = vsel %vm305, 1, 0
        %v308 = vcvt.s32.f32 %v306
        %v309 = vcvt.s32.f32 %v307
        %vm310 = vcmp.lt.f32.partialorder %v302, -1.0
        %vm311 = vcmp.lt.f32.partialorder %v303, -1.0
        %v312 = vsel %vm310, 1, 0
        %v313 = vsel %vm311, 1, 0
        %v314 = vcvt.s32.f32 %v312
        %v315 = vcvt.s32.f32 %v313
        %s316 = scalar_lea.vmem %s166, 128 [#allocation6]
        %317 = vst [vmem:[%s316] sm:$0xff] %v308
        %318 = vst [vmem:[%s316 + $0x10] sm:$0xff] %v309
        %319 = vst [vmem:[%s316 + $0x8] sm:$0xff] %v314
        %320 = vst [vmem:[%s316 + $0x18] sm:$0xff] %v315
        %v321 = vsub.f32 %v302, %v308
        %v322 = vsub.f32 %v303, %v309
        %v323 = vmul.f32 %v314, -1.0
        %v324 = vmul.f32 %v315, -1.0
        %v325 = vadd.f32 %v321, %v323
        %v326 = vadd.f32 %v322, %v324
        %v327 = vmul.f32 %v325, 0.95122945
        %v328 = vmul.f32 %v326, 0.95122945
        %s329 = scalar_lea.vmem %s148, 80 [#allocation3]
        %v330 = vld [vmem:[%s329] sm:$0xff]
        %v331 = vld [vmem:[%s329 + $0x8] sm:$0xff]
        %v332 = vadd.f32 %v327, %v330
        %v333 = vadd.f32 %v328, %v331
        %vm334 = vcmp.gt.f32.partialorder %v332, 1.0
        %vm335 = vcmp.gt.f32.partialorder %v333, 1.0
        %v336 = vsel %vm334, 1, 0
        %v337 = vsel %vm335, 1, 0
        %v338 = vcvt.s32.f32 %v336
        %v339 = vcvt.s32.f32 %v337
        %vm340 = vcmp.lt.f32.partialorder %v332, -1.0
        %vm341 = vcmp.lt.f32.partialorder %v333, -1.0
        %v342 = vsel %vm340, 1, 0
        %v343 = vsel %vm341, 1, 0
        %v344 = vcvt.s32.f32 %v342
        %v345 = vcvt.s32.f32 %v343
        %s346 = scalar_lea.vmem %s166, 160 [#allocation6]
        %347 = vst [vmem:[%s346] sm:$0xff] %v338
        %348 = vst [vmem:[%s346 + $0x10] sm:$0xff] %v339
        %349 = vst [vmem:[%s346 + $0x8] sm:$0xff] %v344
        %350 = vst [vmem:[%s346 + $0x18] sm:$0xff] %v345
        %v351 = vsub.f32 %v332, %v338
        %v352 = vsub.f32 %v333, %v339
        %v353 = vmul.f32 %v344, -1.0
        %v354 = vmul.f32 %v345, -1.0
        %v355 = vadd.f32 %v351, %v353
        %v356 = vadd.f32 %v352, %v354
        %v357 = vmul.f32 %v355, 0.95122945
        %v358 = vmul.f32 %v356, 0.95122945
        %s359 = scalar_lea.vmem %s148, 96 [#allocation3]
        %v360 = vld [vmem:[%s359] sm:$0xff]
        %v361 = vld [vmem:[%s359 + $0x8] sm:$0xff]
        %v362 = vadd.f32 %v357, %v360
        %v363 = vadd.f32 %v358, %v361
        %vm364 = vcmp.gt.f32.partialorder %v362, 1.0
        %vm365 = vcmp.gt.f32.partialorder %v363, 1.0
        %v366 = vsel %vm364, 1, 0
        %v367 = vsel %vm365, 1, 0
        %v368 = vcvt.s32.f32 %v366
        %v369 = vcvt.s32.f32 %v367
        %vm370 = vcmp.lt.f32.partialorder %v362, -1.0
        %vm371 = vcmp.lt.f32.partialorder %v363, -1.0
        %v372 = vsel %vm370, 1, 0
        %v373 = vsel %vm371, 1, 0
        %v374 = vcvt.s32.f32 %v372
        %v375 = vcvt.s32.f32 %v373
        %s376 = scalar_lea.vmem %s166, 192 [#allocation6]
        %377 = vst [vmem:[%s376] sm:$0xff] %v368
        %378 = vst [vmem:[%s376 + $0x10] sm:$0xff] %v369
        %379 = vst [vmem:[%s376 + $0x8] sm:$0xff] %v374
        %380 = vst [vmem:[%s376 + $0x18] sm:$0xff] %v375
        %v381 = vsub.f32 %v362, %v368
        %v382 = vsub.f32 %v363, %v369
        %v383 = vmul.f32 %v374, -1.0
        %v384 = vmul.f32 %v375, -1.0
        %v385 = vadd.f32 %v381, %v383
        %v386 = vadd.f32 %v382, %v384
        %v387 = vmul.f32 %v385, 0.95122945
        %v388 = vmul.f32 %v386, 0.95122945
        %s389 = scalar_lea.vmem %s148, 112 [#allocation3]
        %v390 = vld [vmem:[%s389] sm:$0xff]
        %v391 = vld [vmem:[%s389 + $0x8] sm:$0xff]
        %v392 = vadd.f32 %v387, %v390
        %v393 = vadd.f32 %v388, %v391
        %vm394 = vcmp.gt.f32.partialorder %v392, 1.0
        %vm395 = vcmp.gt.f32.partialorder %v393, 1.0
        %v396 = vsel %vm394, 1, 0
        %v397 = vsel %vm395, 1, 0
        %v398 = vcvt.s32.f32 %v396
        %v399 = vcvt.s32.f32 %v397
        %vm400 = vcmp.lt.f32.partialorder %v392, -1.0
        %vm401 = vcmp.lt.f32.partialorder %v393, -1.0
        %v402 = vsel %vm400, 1, 0
        %v403 = vsel %vm401, 1, 0
        %v404 = vcvt.s32.f32 %v402
        %v405 = vcvt.s32.f32 %v403
        %s406 = scalar_lea.vmem %s166, 224 [#allocation6]
        %407 = vst [vmem:[%s406] sm:$0xff] %v398
        %408 = vst [vmem:[%s406 + $0x10] sm:$0xff] %v399
        %409 = vst [vmem:[%s406 + $0x8] sm:$0xff] %v404
        %410 = vst [vmem:[%s406 + $0x18] sm:$0xff] %v405
        %v411 = vsub.f32 %v392, %v398
        %v412 = vsub.f32 %v393, %v399
        %v413 = vmul.f32 %v404, -1.0
        %v414 = vmul.f32 %v405, -1.0
        %v415 = vadd.f32 %v411, %v413
        %v416 = vadd.f32 %v412, %v414
        %v417 = vmul.f32 %v415, 0.95122945
        %v418 = vmul.f32 %v416, 0.95122945
        %s419 = scalar_lea.vmem %s148, 128 [#allocation3]
        %v420 = vld [vmem:[%s419] sm:$0xff]
        %v421 = vld [vmem:[%s419 + $0x8] sm:$0xff]
        %v422 = vadd.f32 %v417, %v420
        %v423 = vadd.f32 %v418, %v421
        %vm424 = vcmp.gt.f32.partialorder %v422, 1.0
        %vm425 = vcmp.gt.f32.partialorder %v423, 1.0
        %v426 = vsel %vm424, 1, 0
        %v427 = vsel %vm425, 1, 0
        %v428 = vcvt.s32.f32 %v426
        %v429 = vcvt.s32.f32 %v427
        %vm430 = vcmp.lt.f32.partialorder %v422, -1.0
        %vm431 = vcmp.lt.f32.partialorder %v423, -1.0
        %v432 = vsel %vm430, 1, 0
        %v433 = vsel %vm431, 1, 0
        %v434 = vcvt.s32.f32 %v432
        %v435 = vcvt.s32.f32 %v433
        %s436 = scalar_lea.vmem %s166, 256 [#allocation6]
        %437 = vst [vmem:[%s436] sm:$0xff] %v428
        %438 = vst [vmem:[%s436 + $0x10] sm:$0xff] %v429
        %439 = vst [vmem:[%s436 + $0x8] sm:$0xff] %v434
        %440 = vst [vmem:[%s436 + $0x18] sm:$0xff] %v435
        %v441 = vsub.f32 %v422, %v428
        %v442 = vsub.f32 %v423, %v429
        %v443 = vmul.f32 %v434, -1.0
        %v444 = vmul.f32 %v435, -1.0
        %v445 = vadd.f32 %v441, %v443
        %v446 = vadd.f32 %v442, %v444
        %v447 = vmul.f32 %v445, 0.95122945
        %v448 = vmul.f32 %v446, 0.95122945
        %s449 = scalar_lea.vmem %s148, 144 [#allocation3]
        %v450 = vld [vmem:[%s449] sm:$0xff]
        %v451 = vld [vmem:[%s449 + $0x8] sm:$0xff]
        %v452 = vadd.f32 %v447, %v450
        %v453 = vadd.f32 %v448, %v451
        %vm454 = vcmp.gt.f32.partialorder %v452, 1.0
        %vm455 = vcmp.gt.f32.partialorder %v453, 1.0
        %v456 = vsel %vm454, 1, 0
        %v457 = vsel %vm455, 1, 0
        %v458 = vcvt.s32.f32 %v456
        %v459 = vcvt.s32.f32 %v457
        %vm460 = vcmp.lt.f32.partialorder %v452, -1.0
        %vm461 = vcmp.lt.f32.partialorder %v453, -1.0
        %v462 = vsel %vm460, 1, 0
        %v463 = vsel %vm461, 1, 0
        %v464 = vcvt.s32.f32 %v462
        %v465 = vcvt.s32.f32 %v463
        %s466 = scalar_lea.vmem %s166, 288 [#allocation6]
        %467 = vst [vmem:[%s466] sm:$0xff] %v458
        %468 = vst [vmem:[%s466 + $0x10] sm:$0xff] %v459
        %469 = vst [vmem:[%s466 + $0x8] sm:$0xff] %v464
        %470 = vst [vmem:[%s466 + $0x18] sm:$0xff] %v465
        %v471 = vsub.f32 %v452, %v458
        %v472 = vsub.f32 %v453, %v459
        %v473 = vmul.f32 %v464, -1.0
        %v474 = vmul.f32 %v465, -1.0
        %v475 = vadd.f32 %v471, %v473
        %v476 = vadd.f32 %v472, %v474
        %v477 = vmul.f32 %v475, 0.95122945
        %v478 = vmul.f32 %v476, 0.95122945
        %s479 = scalar_lea.vmem %s148, 160 [#allocation3]
        %v480 = vld [vmem:[%s479] sm:$0xff]
        %v481 = vld [vmem:[%s479 + $0x8] sm:$0xff]
        %v482 = vadd.f32 %v477, %v480
        %v483 = vadd.f32 %v478, %v481
        %vm484 = vcmp.gt.f32.partialorder %v482, 1.0
        %vm485 = vcmp.gt.f32.partialorder %v483, 1.0
        %v486 = vsel %vm484, 1, 0
        %v487 = vsel %vm485, 1, 0
        %v488 = vcvt.s32.f32 %v486
        %v489 = vcvt.s32.f32 %v487
        %vm490 = vcmp.lt.f32.partialorder %v482, -1.0
        %vm491 = vcmp.lt.f32.partialorder %v483, -1.0
        %v492 = vsel %vm490, 1, 0
        %v493 = vsel %vm491, 1, 0
        %v494 = vcvt.s32.f32 %v492
        %v495 = vcvt.s32.f32 %v493
        %s496 = scalar_lea.vmem %s166, 320 [#allocation6]
        %497 = vst [vmem:[%s496] sm:$0xff] %v488
        %498 = vst [vmem:[%s496 + $0x10] sm:$0xff] %v489
        %499 = vst [vmem:[%s496 + $0x8] sm:$0xff] %v494
        %500 = vst [vmem:[%s496 + $0x18] sm:$0xff] %v495
        %v501 = vsub.f32 %v482, %v488
        %v502 = vsub.f32 %v483, %v489
        %v503 = vmul.f32 %v494, -1.0
        %v504 = vmul.f32 %v495, -1.0
        %v505 = vadd.f32 %v501, %v503
        %v506 = vadd.f32 %v502, %v504
        %v507 = vmul.f32 %v505, 0.95122945
        %v508 = vmul.f32 %v506, 0.95122945
        %s509 = scalar_lea.vmem %s148, 176 [#allocation3]
        %v510 = vld [vmem:[%s509] sm:$0xff]
        %v511 = vld [vmem:[%s509 + $0x8] sm:$0xff]
        %v512 = vadd.f32 %v507, %v510
        %v513 = vadd.f32 %v508, %v511
        %vm514 = vcmp.gt.f32.partialorder %v512, 1.0
        %vm515 = vcmp.gt.f32.partialorder %v513, 1.0
        %v516 = vsel %vm514, 1, 0
        %v517 = vsel %vm515, 1, 0
        %v518 = vcvt.s32.f32 %v516
        %v519 = vcvt.s32.f32 %v517
        %vm520 = vcmp.lt.f32.partialorder %v512, -1.0
        %vm521 = vcmp.lt.f32.partialorder %v513, -1.0
        %v522 = vsel %vm520, 1, 0
        %v523 = vsel %vm521, 1, 0
        %v524 = vcvt.s32.f32 %v522
        %v525 = vcvt.s32.f32 %v523
        %s526 = scalar_lea.vmem %s166, 352 [#allocation6]
        %527 = vst [vmem:[%s526] sm:$0xff] %v518
        %528 = vst [vmem:[%s526 + $0x10] sm:$0xff] %v519
        %529 = vst [vmem:[%s526 + $0x8] sm:$0xff] %v524
        %530 = vst [vmem:[%s526 + $0x18] sm:$0xff] %v525
        %v531 = vsub.f32 %v512, %v518
        %v532 = vsub.f32 %v513, %v519
        %v533 = vmul.f32 %v524, -1.0
        %v534 = vmul.f32 %v525, -1.0
        %v535 = vadd.f32 %v531, %v533
        %v536 = vadd.f32 %v532, %v534
        %v537 = vmul.f32 %v535, 0.95122945
        %v538 = vmul.f32 %v536, 0.95122945
        %s539 = scalar_lea.vmem %s148, 192 [#allocation3]
        %v540 = vld [vmem:[%s539] sm:$0xff]
        %v541 = vld [vmem:[%s539 + $0x8] sm:$0xff]
        %v542 = vadd.f32 %v537, %v540
        %v543 = vadd.f32 %v538, %v541
        %vm544 = vcmp.gt.f32.partialorder %v542, 1.0
        %vm545 = vcmp.gt.f32.partialorder %v543, 1.0
        %v546 = vsel %vm544, 1, 0
        %v547 = vsel %vm545, 1, 0
        %v548 = vcvt.s32.f32 %v546
        %v549 = vcvt.s32.f32 %v547
        %vm550 = vcmp.lt.f32.partialorder %v542, -1.0
        %vm551 = vcmp.lt.f32.partialorder %v543, -1.0
        %v552 = vsel %vm550, 1, 0
        %v553 = vsel %vm551, 1, 0
        %v554 = vcvt.s32.f32 %v552
        %v555 = vcvt.s32.f32 %v553
        %s556 = scalar_lea.vmem %s166, 384 [#allocation6]
        %557 = vst [vmem:[%s556] sm:$0xff] %v548
        %558 = vst [vmem:[%s556 + $0x10] sm:$0xff] %v549
        %559 = vst [vmem:[%s556 + $0x8] sm:$0xff] %v554
        %560 = vst [vmem:[%s556 + $0x18] sm:$0xff] %v555
        %v561 = vsub.f32 %v542, %v548
        %v562 = vsub.f32 %v543, %v549
        %v563 = vmul.f32 %v554, -1.0
        %v564 = vmul.f32 %v555, -1.0
        %v565 = vadd.f32 %v561, %v563
        %v566 = vadd.f32 %v562, %v564
        %v567 = vmul.f32 %v565, 0.95122945
        %v568 = vmul.f32 %v566, 0.95122945
        %s569 = scalar_lea.vmem %s148, 208 [#allocation3]
        %v570 = vld [vmem:[%s569] sm:$0xff]
        %v571 = vld [vmem:[%s569 + $0x8] sm:$0xff]
        %v572 = vadd.f32 %v567, %v570
        %v573 = vadd.f32 %v568, %v571
        %vm574 = vcmp.gt.f32.partialorder %v572, 1.0
        %vm575 = vcmp.gt.f32.partialorder %v573, 1.0
        %v576 = vsel %vm574, 1, 0
        %v577 = vsel %vm575, 1, 0
        %v578 = vcvt.s32.f32 %v576
        %v579 = vcvt.s32.f32 %v577
        %vm580 = vcmp.lt.f32.partialorder %v572, -1.0
        %vm581 = vcmp.lt.f32.partialorder %v573, -1.0
        %v582 = vsel %vm580, 1, 0
        %v583 = vsel %vm581, 1, 0
        %v584 = vcvt.s32.f32 %v582
        %v585 = vcvt.s32.f32 %v583
        %s586 = scalar_lea.vmem %s166, 416 [#allocation6]
        %587 = vst [vmem:[%s586] sm:$0xff] %v578
        %588 = vst [vmem:[%s586 + $0x10] sm:$0xff] %v579
        %589 = vst [vmem:[%s586 + $0x8] sm:$0xff] %v584
        %590 = vst [vmem:[%s586 + $0x18] sm:$0xff] %v585
        %v591 = vsub.f32 %v572, %v578
        %v592 = vsub.f32 %v573, %v579
        %v593 = vmul.f32 %v584, -1.0
        %v594 = vmul.f32 %v585, -1.0
        %v595 = vadd.f32 %v591, %v593
        %v596 = vadd.f32 %v592, %v594
        %v597 = vmul.f32 %v595, 0.95122945
        %v598 = vmul.f32 %v596, 0.95122945
        %s599 = scalar_lea.vmem %s148, 224 [#allocation3]
        %v600 = vld [vmem:[%s599] sm:$0xff]
        %v601 = vld [vmem:[%s599 + $0x8] sm:$0xff]
        %v602 = vadd.f32 %v597, %v600
        %v603 = vadd.f32 %v598, %v601
        %vm604 = vcmp.gt.f32.partialorder %v602, 1.0
        %vm605 = vcmp.gt.f32.partialorder %v603, 1.0
        %v606 = vsel %vm604, 1, 0
        %v607 = vsel %vm605, 1, 0
        %v608 = vcvt.s32.f32 %v606
        %v609 = vcvt.s32.f32 %v607
        %vm610 = vcmp.lt.f32.partialorder %v602, -1.0
        %vm611 = vcmp.lt.f32.partialorder %v603, -1.0
        %v612 = vsel %vm610, 1, 0
        %v613 = vsel %vm611, 1, 0
        %v614 = vcvt.s32.f32 %v612
        %v615 = vcvt.s32.f32 %v613
        %s616 = scalar_lea.vmem %s166, 448 [#allocation6]
        %617 = vst [vmem:[%s616] sm:$0xff] %v608
        %618 = vst [vmem:[%s616 + $0x10] sm:$0xff] %v609
        %619 = vst [vmem:[%s616 + $0x8] sm:$0xff] %v614
        %620 = vst [vmem:[%s616 + $0x18] sm:$0xff] %v615
        %v621 = vsub.f32 %v602, %v608
        %v622 = vsub.f32 %v603, %v609
        %v623 = vmul.f32 %v614, -1.0
        %v624 = vmul.f32 %v615, -1.0
        %v625 = vadd.f32 %v621, %v623
        %v626 = vadd.f32 %v622, %v624
        %v627 = vmul.f32 %v625, 0.95122945
        %v628 = vmul.f32 %v626, 0.95122945
        %s629 = scalar_lea.vmem %s148, 240 [#allocation3]
        %v630 = vld [vmem:[%s629] sm:$0xff]
        %v631 = vld [vmem:[%s629 + $0x8] sm:$0xff]
        %v632 = vadd.f32 %v627, %v630
        %v633 = vadd.f32 %v628, %v631
        %vm634 = vcmp.gt.f32.partialorder %v632, 1.0
        %vm635 = vcmp.gt.f32.partialorder %v633, 1.0
        %v636 = vsel %vm634, 1, 0
        %v637 = vsel %vm635, 1, 0
        %v638 = vcvt.s32.f32 %v636
        %v639 = vcvt.s32.f32 %v637
        %vm640 = vcmp.lt.f32.partialorder %v632, -1.0
        %vm641 = vcmp.lt.f32.partialorder %v633, -1.0
        %v642 = vsel %vm640, 1, 0
        %v643 = vsel %vm641, 1, 0
        %v644 = vcvt.s32.f32 %v642
        %v645 = vcvt.s32.f32 %v643
        %s646 = scalar_lea.vmem %s166, 480 [#allocation6]
        %647 = vst [vmem:[%s646] sm:$0xff] %v638
        %648 = vst [vmem:[%s646 + $0x10] sm:$0xff] %v639
        %649 = vst [vmem:[%s646 + $0x8] sm:$0xff] %v644
        %650 = vst [vmem:[%s646 + $0x18] sm:$0xff] %v645
        %v651 = vsub.f32 %v632, %v638
        %v652 = vsub.f32 %v633, %v639
        %v653 = vmul.f32 %v644, -1.0
        %v654 = vmul.f32 %v645, -1.0
        %v655 = vadd.f32 %v651, %v653
        %v656 = vadd.f32 %v652, %v654
        %657 = vst [vmem:[#allocation2] sm:$0xff] %v655
        %658 = vst [vmem:[#allocation2 + $0x8] sm:$0xff] %v656
        %s659 = sand.u32 %s79, 1
        %s660 = scalar_lea.sflag [#allocation5], %s659
        %s661 = sand.u32 %s79, 1
        %s662 = smul.addr %s661, 512
        %s663 = scalar_lea.vmem [#allocation6], %s662
        // Predicated region
        $region33: #{tpu_custom_call.1} parent=23 // pred_check
          %p664 = pneg %p89
        $region34: #{tpu_custom_call.1} parent=23 // pred_check_branch
          %666 = sbr.rel (%p664) target = $region36
        $region35: #{tpu_custom_call.1} parent=23 // pred_region
          %s667 = smul.u32 16, %s25
          %s668 = smul.u32 2, %s24
          %s670 = ssub.s32 8192, 8192
          %671 = vsyncadd %s660, %s670
          %s672 = smul.addr %s668, 2
          %s673 = smul.addr %s667, 4
          %s674 = sadd.s32 %s672, %s673
          %s675 = smul.addr %s23, 128
          %s676 = sadd.s32 %s674, %s675
          %s677 = smul.addr %s676, 128
          %s678 = scalar_lea.hbm %s1, %s677
          %s679 = sshll.u32 %s663, 4
          %s680 = int_to_ptr.vmem [resolvable:$true] %s679
          %685 = dma.vmem_to_hbm [thread:$0]  %s680, 8192, %s678, %s660, 256, 256, 16
        $region36: #{tpu_custom_call.1} parent=23 // pred_fallthru
          _
      $region24: #{tpu_custom_call.1} parent=5 // pred_fallthru
        _
      %p686 = scmp.le.s32.totalorder 2, %s13
      // Predicated region
      $region37: #{tpu_custom_call.1} parent=5 // pred_check
        %p687 = pneg %p686
      $region38: #{tpu_custom_call.1} parent=5 // pred_check_branch
        %689 = sbr.rel (%p687) target = $region40
      $region39: #{tpu_custom_call.1} parent=5 // pred_region
        %s690 = ssub.s32 %s13, 2
        // Predicated region
        $region41: #{tpu_custom_call.1} parent=39 // pred_check
          %p691 = pneg %p95
        $region42: #{tpu_custom_call.1} parent=39 // pred_check_branch
          %693 = sbr.rel (%p691) target = $region44
        $region43: #{tpu_custom_call.1} parent=39 // pred_region
          %s694 = sand.u32 %s80, 1
          %s695 = scalar_lea.sflag [#allocation5], %s694
          %s696 = sand.u32 %s80, 1
          %s697 = smul.addr %s696, 512
          %s698 = scalar_lea.vmem [#allocation6], %s697
          %699 = dma.done %s695, 8192
        $region44: #{tpu_custom_call.1} parent=39 // pred_fallthru
          _
      $region40: #{tpu_custom_call.1} parent=5 // pred_fallthru
        _
    $region6: #{tpu_custom_call.1} parent=1 // loop_footer
      %s17 = sadd.s32 1, %s13
    $region7: #{tpu_custom_call.1} parent=1 // loop_footer_branch
      %12 = sbr.rel target = $region3
    $region8: #{tpu_custom_call.1} parent=1 // loop_exit
      _
    %700 = vsyncpa [#allocation4], 1
    %s701 = scalar_lea.sflag [#allocation4], 1
    %702 = vsyncpa %s701, 1
    %703 = vsyncpa [#allocation5], 1
    %s704 = scalar_lea.sflag [#allocation5], 1
    %705 = vsyncpa %s704, 1

</llo_original>
